<compile_context>
chip_gen: v7x
topology: tpu7x:2x2x1
jax: 0.10.0
libtpu: 0.0.40
codegen_flags: <defaults>
</compile_context>

<pallas_src>
import functools

import jax
import jax.numpy as jnp
from jax.experimental import pallas as pl
from jax.experimental.pallas import tpu as pltpu

_BN_EPS = 1e-5


def _round_up(x, m):
    return (x + m - 1) // m * m


def _vmem_limit_bytes():
    """~75% of this generation's physical VMEM (48 MiB on v7x, 96 MiB on v5e/v6e)."""
    try:
        cap = int(pltpu.get_tpu_info().vmem_capacity_bytes)
    except Exception:  # query unavailable -> conservative (v7x-sized) fallback
        cap = 64 * 1024 * 1024
    return (cap // 4) * 3


def _choose_lane_tile(cin, cout, lp, budget_bytes):
    """Largest lane tile TL (multiple of 128) whose per-step working set fits budget."""
    # bytes per output lane: 2x bf16 input window, 2x f32 output block, f32 accumulator,
    # bf16 9-tap stacked operand.
    per_lane = 2 * (2 * cin) + 2 * (4 * cout) + 4 * cout + 2 * (9 * cin)
    tl = budget_bytes // max(per_lane, 1)
    tl = max(128, min(tl, 16 * 1024, _round_up(lp, 128)))
    return max(128, tl // 128 * 128)


def _conv3x3_kernel(x_ref, w_ref, b_ref, o_ref, *, tap_offsets, base, tl, apply_relu):
    """Fused 3x3 conv (+bias, +optional ReLU) on one lane tile of a flattened image.

    x_ref: (Cin, TW)      bf16 flattened window: TL output positions + full 3x3 halo.
    w_ref: (Cout, 9*Cin)  bf16 weights, column order (dh*3 + dw)*Cin + ci.
    b_ref: (Cout, 1)      f32 bias (post-conv BatchNorm already folded in).
    o_ref: (Cout, TL)     f32 lane-dense output tile.
    """
    # Stack the 9 statically shifted views -> (9*Cin, TL), then ONE MXU matmul with
    # contraction depth 9*Cin (no explicit accumulator init / per-tap VPU adds).
    taps = [x_ref[:, base + off: base + off + tl] for off in tap_offsets]
    stacked = jnp.concatenate(taps, axis=0)
    acc = jnp.dot(w_ref[...], stacked, preferred_element_type=jnp.float32)
    acc = acc + b_ref[...]
    if apply_relu:
        acc = jnp.maximum(acc, 0.0)
    o_ref[...] = acc.astype(o_ref.dtype)


def conv3x3_bias_act(x_nchw, w_oihw, bias, *, relu=True):
    """3x3 conv, stride 1, padding 1 (+bias, +optional ReLU). NCHW in / NCHW out."""
    n, cin, h, w = x_nchw.shape
    cout = w_oihw.shape[0]
    hp, wp = h + 2, w + 2
    lp = hp * wp                                  # flattened padded spatial length

    vmem_limit = _vmem_limit_bytes()
    tl = _choose_lane_tile(cin, cout, lp, (vmem_limit * 4) // 5)
    l_out = _round_up(lp, tl)                     # lane-dense output length (k * TL)
    num_tiles = l_out // tl
    halo = 2 * wp                                 # leading halo = 2 whole rows >= wp+1
    tw = tl + 3 * wp + 1                          # window: TL positions + full halo

    # ONE pad builds the conv zero ring AND the flat halo as whole extra rows:
    #   rows = [2 halo][1 conv pad][h image rows][1 conv pad][t_rows halo]
    rows_total = -(-(l_out + 1) // wp) + 3
    t_rows = rows_total - (h + 4)                 # >= 2 by construction
    xp = jnp.pad(x_nchw, ((0, 0), (0, 0), (3, 1 + t_rows), (1, 1)))
    xf = xp.reshape(n, cin, rows_total * wp).astype(jnp.bfloat16)

    # Overlapped per-tile windows (halo-duplicated) so all in-kernel slices are static
    # and all BlockSpecs are plain Blocked.  XLA fuses pad + slice + stack + cast.
    xw = jnp.stack([xf[:, :, t * tl: t * tl + tw] for t in range(num_tiles)], axis=1)

    # (Cout, Cin, 3, 3) -> (Cout, 9*Cin), column order (dh*3 + dw)*Cin + ci.
    w2d = jnp.transpose(w_oihw, (0, 2, 3, 1)).reshape(cout, 9 * cin)
    w2d = w2d.astype(jnp.bfloat16)
    b_col = bias.reshape(cout, 1).astype(jnp.float32)

    tap_offsets = tuple((dh - 1) * wp + (dw - 1) for dh in range(3) for dw in range(3))
    kernel = functools.partial(_conv3x3_kernel, tap_offsets=tap_offsets,
                               base=halo, tl=tl, apply_relu=relu)

    flops = 2 * n * l_out * cout * 9 * cin
    bytes_accessed = (2 * n * num_tiles * cin * tw + 4 * n * cout * l_out
                      + 2 * cout * 9 * cin + 4 * cout)

    out_flat = pl.pallas_call(
        kernel,
        out_shape=jax.ShapeDtypeStruct((n, cout, l_out), jnp.float32),
        grid_spec=pltpu.PrefetchScalarGridSpec(
            num_scalar_prefetch=0,
            grid=(n, num_tiles),
            in_specs=[
                pl.BlockSpec((None, None, cin, tw), lambda i, j: (i, j, 0, 0)),
                pl.BlockSpec((cout, 9 * cin), lambda i, j: (0, 0)),
                pl.BlockSpec((cout, 1), lambda i, j: (0, 0)),
            ],
            out_specs=pl.BlockSpec((None, cout, tl), lambda i, j: (i, 0, j)),
        ),
        compiler_params=pltpu.CompilerParams(
            dimension_semantics=("parallel", "parallel"),
            vmem_limit_bytes=int(vmem_limit),
        ),
        cost_estimate=pl.CostEstimate(
            flops=flops, transcendentals=0, bytes_accessed=bytes_accessed),
    )(xw, w2d, b_col)

    # Keep only the interior (valid) positions of the padded grid.
    y = out_flat[:, :, :lp].reshape(n, cout, hp, wp)
    return y[:, :, 1:-1, 1:-1]


def _fold_bn_after_conv(w, b, gamma, beta, mean, var):
    """Fold inference-mode BatchNorm applied AFTER a conv into (w, b) exactly."""
    s = gamma * jax.lax.rsqrt(var + _BN_EPS)
    return w * s[:, None, None, None], (b - mean) * s + beta


def _fold_bn_before_conv(w, gamma, beta, mean, var):
    """Fold the *scale* of a BatchNorm applied BEFORE a conv into the conv weights.

    BN(x) = s*x + t, s = gamma/sqrt(var+eps), t = beta - s*mean.  Because the conv
    zero-pads its input, only the per-input-channel scale folds into the weights; the
    residual shift t/s = beta/s - mean must still be added to the (unpadded) conv
    input, which XLA fuses with the preceding concat.  Assumes gamma != 0 (PyTorch
    initializes gamma to 1).
    """
    s = gamma * jax.lax.rsqrt(var + _BN_EPS)
    return w * s[None, :, None, None], beta / s - mean


def _pixel_shuffle(x, r=2):
    """torch.nn.PixelShuffle(r): (N, C*r*r, H, W) -> (N, C, H*r, W*r)."""
    n, crr, h, w = x.shape
    c = crr // (r * r)
    x = x.reshape(n, c, r, r, h, w)
    x = jnp.transpose(x, (0, 1, 4, 2, 5, 3))
    return x.reshape(n, c, h * r, w * r)


@jax.jit
def up_conv_forward(x1, x2, params):
    """Pallas forward of up_conv.forward(upconv_input1, upconv_input2)."""
    # --- self.up: Conv2d(C -> 2C) + BN1 (folded) + ReLU, then PixelShuffle(2).
    w1, b1 = _fold_bn_after_conv(params["w1"], params["b1"], params["g1"],
                                 params["be1"], params["m1"], params["v1"])
    y1 = conv3x3_bias_act(x1, w1, b1, relu=True)
    y1 = _pixel_shuffle(y1, 2)                           # layout-only (XLA)

    # --- concat with the skip connection, then self.upconv.
    cat = jnp.concatenate([y1, x2], axis=1)              # layout-only (XLA)
    # BN2 scale folded exactly into w2 (per input channel); only the +shift remains as
    # an XLA add that fuses with the concat.  BN3 (after the conv) folds into (w, b).
    w2s, shift2 = _fold_bn_before_conv(params["w2"], params["g2"], params["be2"],
                                       params["m2"], params["v2"])
    w2, b2 = _fold_bn_after_conv(w2s, params["b2"], params["g3"],
                                 params["be3"], params["m3"], params["v3"])
    cat = cat + shift2[None, :, None, None]
    return conv3x3_bias_act(cat, w2, b2, relu=True)


# ----------------------------- pure-JAX reference -----------------------------
def _conv3x3_ref(x, w, b):
    y = jax.lax.conv_general_dilated(
        x, w, window_strides=(1, 1), padding=((1, 1), (1, 1)),
        dimension_numbers=("NCHW", "OIHW", "NCHW"),
        precision=jax.lax.Precision.HIGHEST)
    return y + b[None, :, None, None]


def _bn_ref(x, gamma, beta, mean, var):
    return ((x - mean[None, :, None, None])
            / jnp.sqrt(var[None, :, None, None] + _BN_EPS)
            * gamma[None, :, None, None] + beta[None, :, None, None])


def up_conv_reference(x1, x2, p):
    y1 = _conv3x3_ref(x1, p["w1"], p["b1"])
    y1 = jnp.maximum(_bn_ref(y1, p["g1"], p["be1"], p["m1"], p["v1"]), 0.0)
    y1 = _pixel_shuffle(y1, 2)
    cat = jnp.concatenate([y1, x2], axis=1)
    z = _bn_ref(cat, p["g2"], p["be2"], p["m2"], p["v2"])
    z = _conv3x3_ref(z, p["w2"], p["b2"])
    return jnp.maximum(_bn_ref(z, p["g3"], p["be3"], p["m3"], p["v3"]), 0.0)


if __name__ == "__main__":
    N, C_IN, C_OUT, H, W = 2, 4, 4, 16, 16
    key = jax.random.PRNGKey(0)
    ks = jax.random.split(key, 12)

    x1 = jax.random.normal(ks[0], (N, C_IN, H, W), jnp.float32)
    # PixelShuffle(2) turns 2C channels into C/2 at double resolution, so the skip
    # connection supplies the remaining C/2 channels at (2H, 2W).
    x2 = jax.random.normal(ks[1], (N, C_IN - C_IN // 2, 2 * H, 2 * W), jnp.float32)

    def bn_params(k, c):
        k1, k2, k3, k4 = jax.random.split(k, 4)
        return (0.5 + jax.random.uniform(k1, (c,), jnp.float32),
                0.2 * jax.random.normal(k2, (c,), jnp.float32),
                0.2 * jax.random.normal(k3, (c,), jnp.float32),
                0.5 + jax.random.uniform(k4, (c,), jnp.float32))

    g1, be1, m1, v1 = bn_params(ks[4], 2 * C_IN)
    g2, be2, m2, v2 = bn_params(ks[5], C_IN)
    g3, be3, m3, v3 = bn_params(ks[6], C_OUT)
    params = dict(
        w1=0.2 * jax.random.normal(ks[2], (2 * C_IN, C_IN, 3, 3), jnp.float32),
        b1=0.1 * jax.random.normal(ks[3], (2 * C_IN,), jnp.float32),
        g1=g1, be1=be1, m1=m1, v1=v1,
        g2=g2, be2=be2, m2=m2, v2=v2,
        w2=0.2 * jax.random.normal(ks[7], (C_OUT, C_IN, 3, 3), jnp.float32),
        b2=0.1 * jax.random.normal(ks[8], (C_OUT,), jnp.float32),
        g3=g3, be3=be3, m3=m3, v3=v3,
    )

    y = up_conv_forward(x1, x2, params)
    jax.block_until_ready(y)

    y_ref = up_conv_reference(x1, x2, params)
    assert y.shape == (N, C_OUT, 2 * H, 2 * W), y.shape
    # Tolerance accommodates bf16 matmul operands (f32 accumulation) inside the kernel
    # vs. the HIGHEST-precision f32 XLA reference across two chained convs; structural
    # bugs (wrong tap/offset/fold) would produce O(1) errors, far above these bounds.
    err = jnp.abs(y - y_ref)
    max_err = float(jnp.max(err))
    mean_err = float(jnp.mean(err))
    assert max_err < 7.5e-2, f"max abs err {max_err}"
    assert mean_err < 1e-2, f"mean abs err {mean_err}"
    print("KERNEL_OK")
</pallas_src>

<mosaic_0001>
module attributes {stable_mosaic.version = 11 : i64} {
  func.func @_conv3x3_kernel(%arg0: i32, %arg1: i32, %arg2: memref<1x1x4x439xbf16, #tpu.memory_space<vmem>>, %arg3: memref<8x36xbf16, #tpu.memory_space<vmem>>, %arg4: memref<8x1xf32, #tpu.memory_space<vmem>>, %arg5: memref<1x8x384xf32, #tpu.memory_space<vmem>>) attributes {dimension_semantics = [#tpu.dimension_semantics<parallel>, #tpu.dimension_semantics<parallel>], iteration_bounds = array<i64: 2, 1>, scalar_prefetch = 0 : i64, scratch_operands = 0 : i64, tpu.core_type = #tpu.core_type<tc>, window_params = [{transform_indices = @transform_0, window_bounds = array<i64: 1, 1, 4, 439>}, {pipeline_mode = #tpu.pipeline_mode<synchronous>, transform_indices = @transform_1, window_bounds = array<i64: 8, 36>}, {pipeline_mode = #tpu.pipeline_mode<synchronous>, transform_indices = @transform_2, window_bounds = array<i64: 8, 1>}, {transform_indices = @transform_3, window_bounds = array<i64: 1, 8, 384>}]} {
    %c0 = arith.constant 0 : index
    %c0_0 = arith.constant 0 : index
    %c0_1 = arith.constant 0 : index
    %c17 = arith.constant 17 : index
    %0 = vector.load %arg2[%c0, %c0_0, %c0_1, %c17] : memref<1x1x4x439xbf16, #tpu.memory_space<vmem>>, vector<1x1x4x384xbf16>
    %1 = vector.shape_cast %0 : vector<1x1x4x384xbf16> to vector<4x384xbf16>
    %c0_2 = arith.constant 0 : index
    %c0_3 = arith.constant 0 : index
    %c0_4 = arith.constant 0 : index
    %c18 = arith.constant 18 : index
    %2 = vector.load %arg2[%c0_2, %c0_3, %c0_4, %c18] : memref<1x1x4x439xbf16, #tpu.memory_space<vmem>>, vector<1x1x4x384xbf16>
    %3 = vector.shape_cast %2 : vector<1x1x4x384xbf16> to vector<4x384xbf16>
    %c0_5 = arith.constant 0 : index
    %c0_6 = arith.constant 0 : index
    %c0_7 = arith.constant 0 : index
    %c19 = arith.constant 19 : index
    %4 = vector.load %arg2[%c0_5, %c0_6, %c0_7, %c19] : memref<1x1x4x439xbf16, #tpu.memory_space<vmem>>, vector<1x1x4x384xbf16>
    %5 = vector.shape_cast %4 : vector<1x1x4x384xbf16> to vector<4x384xbf16>
    %c0_8 = arith.constant 0 : index
    %c0_9 = arith.constant 0 : index
    %c0_10 = arith.constant 0 : index
    %c35 = arith.constant 35 : index
    %6 = vector.load %arg2[%c0_8, %c0_9, %c0_10, %c35] : memref<1x1x4x439xbf16, #tpu.memory_space<vmem>>, vector<1x1x4x384xbf16>
    %7 = vector.shape_cast %6 : vector<1x1x4x384xbf16> to vector<4x384xbf16>
    %c0_11 = arith.constant 0 : index
    %c0_12 = arith.constant 0 : index
    %c0_13 = arith.constant 0 : index
    %c36 = arith.constant 36 : index
    %8 = vector.load %arg2[%c0_11, %c0_12, %c0_13, %c36] : memref<1x1x4x439xbf16, #tpu.memory_space<vmem>>, vector<1x1x4x384xbf16>
    %9 = vector.shape_cast %8 : vector<1x1x4x384xbf16> to vector<4x384xbf16>
    %c0_14 = arith.constant 0 : index
    %c0_15 = arith.constant 0 : index
    %c0_16 = arith.constant 0 : index
    %c37 = arith.constant 37 : index
    %10 = vector.load %arg2[%c0_14, %c0_15, %c0_16, %c37] : memref<1x1x4x439xbf16, #tpu.memory_space<vmem>>, vector<1x1x4x384xbf16>
    %11 = vector.shape_cast %10 : vector<1x1x4x384xbf16> to vector<4x384xbf16>
    %c0_17 = arith.constant 0 : index
    %c0_18 = arith.constant 0 : index
    %c0_19 = arith.constant 0 : index
    %c53 = arith.constant 53 : index
    %12 = vector.load %arg2[%c0_17, %c0_18, %c0_19, %c53] : memref<1x1x4x439xbf16, #tpu.memory_space<vmem>>, vector<1x1x4x384xbf16>
    %13 = vector.shape_cast %12 : vector<1x1x4x384xbf16> to vector<4x384xbf16>
    %c0_20 = arith.constant 0 : index
    %c0_21 = arith.constant 0 : index
    %c0_22 = arith.constant 0 : index
    %c54 = arith.constant 54 : index
    %14 = vector.load %arg2[%c0_20, %c0_21, %c0_22, %c54] : memref<1x1x4x439xbf16, #tpu.memory_space<vmem>>, vector<1x1x4x384xbf16>
    %15 = vector.shape_cast %14 : vector<1x1x4x384xbf16> to vector<4x384xbf16>
    %c0_23 = arith.constant 0 : index
    %c0_24 = arith.constant 0 : index
    %c0_25 = arith.constant 0 : index
    %c55 = arith.constant 55 : index
    %16 = vector.load %arg2[%c0_23, %c0_24, %c0_25, %c55] : memref<1x1x4x439xbf16, #tpu.memory_space<vmem>>, vector<1x1x4x384xbf16>
    %17 = vector.shape_cast %16 : vector<1x1x4x384xbf16> to vector<4x384xbf16>
    %18 = tpu.concatenate %1, %3, %5, %7, %9, %11, %13, %15, %17 in 0 : vector<4x384xbf16>, vector<4x384xbf16>, vector<4x384xbf16>, vector<4x384xbf16>, vector<4x384xbf16>, vector<4x384xbf16>, vector<4x384xbf16>, vector<4x384xbf16>, vector<4x384xbf16> -> vector<36x384xbf16>
    %c0_26 = arith.constant 0 : index
    %c0_27 = arith.constant 0 : index
    %19 = vector.load %arg3[%c0_26, %c0_27] : memref<8x36xbf16, #tpu.memory_space<vmem>>, vector<8x36xbf16>
    %cst = arith.constant dense<0.000000e+00> : vector<8x384xf32>
    %20 = tpu.matmul %19, %18, %cst {dimension_numbers = #tpu.dot_dimension_numbers<[1], [0], [0], [1], [0, 0, 1, 1], [], []>} : vector<8x36xbf16>, vector<36x384xbf16>, vector<8x384xf32> -> vector<8x384xf32>
    %c0_28 = arith.constant 0 : index
    %c0_29 = arith.constant 0 : index
    %21 = vector.load %arg4[%c0_28, %c0_29] : memref<8x1xf32, #tpu.memory_space<vmem>>, vector<8x1xf32>
    %22 = vector.broadcast %21 : vector<8x1xf32> to vector<8x384xf32>
    %23 = arith.addf %20, %22 : vector<8x384xf32>
    %cst_30 = arith.constant 0.000000e+00 : f32
    %24 = vector.broadcast %cst_30 : f32 to vector<8x384xf32>
    %25 = arith.maximumf %23, %24 : vector<8x384xf32>
    %c0_31 = arith.constant 0 : index
    %c0_32 = arith.constant 0 : index
    %c0_33 = arith.constant 0 : index
    %26 = vector.load %arg5[%c0_31, %c0_32, %c0_33] : memref<1x8x384xf32, #tpu.memory_space<vmem>>, vector<1x8x384xf32>
    %27 = vector.shape_cast %26 : vector<1x8x384xf32> to vector<8x384xf32>
    %28 = vector.shape_cast %25 : vector<8x384xf32> to vector<1x8x384xf32>
    tpu.vector_store %arg5[%c0_31, %c0_32, %c0_33], %28 {strides = array<i32>} : memref<1x8x384xf32, #tpu.memory_space<vmem>>, vector<1x8x384xf32>,
    return
  }
  func.func @transform_0(%arg0: i32, %arg1: i32) -> (i32, i32, i32, i32) {
    %c0_i32 = arith.constant 0 : i32
    %c0_i32_0 = arith.constant 0 : i32
    %c0_i32_1 = arith.constant 0 : i32
    return %arg0, %arg1, %c0_i32, %c0_i32_0 : i32, i32, i32, i32
  }
  func.func @transform_1(%arg0: i32, %arg1: i32) -> (i32, i32) {
    %c0_i32 = arith.constant 0 : i32
    %c0_i32_0 = arith.constant 0 : i32
    %c0_i32_1 = arith.constant 0 : i32
    return %c0_i32, %c0_i32_0 : i32, i32
  }
  func.func @transform_2(%arg0: i32, %arg1: i32) -> (i32, i32) {
    %c0_i32 = arith.constant 0 : i32
    %c0_i32_0 = arith.constant 0 : i32
    %c0_i32_1 = arith.constant 0 : i32
    return %c0_i32, %c0_i32_0 : i32, i32
  }
  func.func @transform_3(%arg0: i32, %arg1: i32) -> (i32, i32, i32) {
    %c0_i32 = arith.constant 0 : i32
    %c0_i32_0 = arith.constant 0 : i32
    return %arg0, %c0_i32, %arg1 : i32, i32, i32
  }
}

module attributes {stable_mosaic.version = 11 : i64} {
  func.func @_conv3x3_kernel(%arg0: i32, %arg1: i32, %arg2: memref<1x1x4x1383xbf16, #tpu.memory_space<vmem>>, %arg3: memref<4x36xbf16, #tpu.memory_space<vmem>>, %arg4: memref<4x1xf32, #tpu.memory_space<vmem>>, %arg5: memref<1x4x1280xf32, #tpu.memory_space<vmem>>) attributes {dimension_semantics = [#tpu.dimension_semantics<parallel>, #tpu.dimension_semantics<parallel>], iteration_bounds = array<i64: 2, 1>, scalar_prefetch = 0 : i64, scratch_operands = 0 : i64, tpu.core_type = #tpu.core_type<tc>, window_params = [{transform_indices = @transform_0, window_bounds = array<i64: 1, 1, 4, 1383>}, {pipeline_mode = #tpu.pipeline_mode<synchronous>, transform_indices = @transform_1, window_bounds = array<i64: 4, 36>}, {pipeline_mode = #tpu.pipeline_mode<synchronous>, transform_indices = @transform_2, window_bounds = array<i64: 4, 1>}, {transform_indices = @transform_3, window_bounds = array<i64: 1, 4, 1280>}]} {
    %c0 = arith.constant 0 : index
    %c0_0 = arith.constant 0 : index
    %c0_1 = arith.constant 0 : index
    %c33 = arith.constant 33 : index
    %0 = vector.load %arg2[%c0, %c0_0, %c0_1, %c33] : memref<1x1x4x1383xbf16, #tpu.memory_space<vmem>>, vector<1x1x4x1280xbf16>
    %1 = vector.shape_cast %0 : vector<1x1x4x1280xbf16> to vector<4x1280xbf16>
    %c0_2 = arith.constant 0 : index
    %c0_3 = arith.constant 0 : index
    %c0_4 = arith.constant 0 : index
    %c34 = arith.constant 34 : index
    %2 = vector.load %arg2[%c0_2, %c0_3, %c0_4, %c34] : memref<1x1x4x1383xbf16, #tpu.memory_space<vmem>>, vector<1x1x4x1280xbf16>
    %3 = vector.shape_cast %2 : vector<1x1x4x1280xbf16> to vector<4x1280xbf16>
    %c0_5 = arith.constant 0 : index
    %c0_6 = arith.constant 0 : index
    %c0_7 = arith.constant 0 : index
    %c35 = arith.constant 35 : index
    %4 = vector.load %arg2[%c0_5, %c0_6, %c0_7, %c35] : memref<1x1x4x1383xbf16, #tpu.memory_space<vmem>>, vector<1x1x4x1280xbf16>
    %5 = vector.shape_cast %4 : vector<1x1x4x1280xbf16> to vector<4x1280xbf16>
    %c0_8 = arith.constant 0 : index
    %c0_9 = arith.constant 0 : index
    %c0_10 = arith.constant 0 : index
    %c67 = arith.constant 67 : index
    %6 = vector.load %arg2[%c0_8, %c0_9, %c0_10, %c67] : memref<1x1x4x1383xbf16, #tpu.memory_space<vmem>>, vector<1x1x4x1280xbf16>
    %7 = vector.shape_cast %6 : vector<1x1x4x1280xbf16> to vector<4x1280xbf16>
    %c0_11 = arith.constant 0 : index
    %c0_12 = arith.constant 0 : index
    %c0_13 = arith.constant 0 : index
    %c68 = arith.constant 68 : index
    %8 = vector.load %arg2[%c0_11, %c0_12, %c0_13, %c68] : memref<1x1x4x1383xbf16, #tpu.memory_space<vmem>>, vector<1x1x4x1280xbf16>
    %9 = vector.shape_cast %8 : vector<1x1x4x1280xbf16> to vector<4x1280xbf16>
    %c0_14 = arith.constant 0 : index
    %c0_15 = arith.constant 0 : index
    %c0_16 = arith.constant 0 : index
    %c69 = arith.constant 69 : index
    %10 = vector.load %arg2[%c0_14, %c0_15, %c0_16, %c69] : memref<1x1x4x1383xbf16, #tpu.memory_space<vmem>>, vector<1x1x4x1280xbf16>
    %11 = vector.shape_cast %10 : vector<1x1x4x1280xbf16> to vector<4x1280xbf16>
    %c0_17 = arith.constant 0 : index
    %c0_18 = arith.constant 0 : index
    %c0_19 = arith.constant 0 : index
    %c101 = arith.constant 101 : index
    %12 = vector.load %arg2[%c0_17, %c0_18, %c0_19, %c101] : memref<1x1x4x1383xbf16, #tpu.memory_space<vmem>>, vector<1x1x4x1280xbf16>
    %13 = vector.shape_cast %12 : vector<1x1x4x1280xbf16> to vector<4x1280xbf16>
    %c0_20 = arith.constant 0 : index
    %c0_21 = arith.constant 0 : index
    %c0_22 = arith.constant 0 : index
    %c102 = arith.constant 102 : index
    %14 = vector.load %arg2[%c0_20, %c0_21, %c0_22, %c102] : memref<1x1x4x1383xbf16, #tpu.memory_space<vmem>>, vector<1x1x4x1280xbf16>
    %15 = vector.shape_cast %14 : vector<1x1x4x1280xbf16> to vector<4x1280xbf16>
    %c0_23 = arith.constant 0 : index
    %c0_24 = arith.constant 0 : index
    %c0_25 = arith.constant 0 : index
    %c103 = arith.constant 103 : index
    %16 = vector.load %arg2[%c0_23, %c0_24, %c0_25, %c103] : memref<1x1x4x1383xbf16, #tpu.memory_space<vmem>>, vector<1x1x4x1280xbf16>
    %17 = vector.shape_cast %16 : vector<1x1x4x1280xbf16> to vector<4x1280xbf16>
    %18 = tpu.concatenate %1, %3, %5, %7, %9, %11, %13, %15, %17 in 0 : vector<4x1280xbf16>, vector<4x1280xbf16>, vector<4x1280xbf16>, vector<4x1280xbf16>, vector<4x1280xbf16>, vector<4x1280xbf16>, vector<4x1280xbf16>, vector<4x1280xbf16>, vector<4x1280xbf16> -> vector<36x1280xbf16>
    %c0_26 = arith.constant 0 : index
    %c0_27 = arith.constant 0 : index
    %19 = vector.load %arg3[%c0_26, %c0_27] : memref<4x36xbf16, #tpu.memory_space<vmem>>, vector<4x36xbf16>
    %cst = arith.constant dense<0.000000e+00> : vector<4x1280xf32>
    %20 = tpu.matmul %19, %18, %cst {dimension_numbers = #tpu.dot_dimension_numbers<[1], [0], [0], [1], [0, 0, 1, 1], [], []>} : vector<4x36xbf16>, vector<36x1280xbf16>, vector<4x1280xf32> -> vector<4x1280xf32>
    %c0_28 = arith.constant 0 : index
    %c0_29 = arith.constant 0 : index
    %21 = vector.load %arg4[%c0_28, %c0_29] : memref<4x1xf32, #tpu.memory_space<vmem>>, vector<4x1xf32>
    %22 = vector.broadcast %21 : vector<4x1xf32> to vector<4x1280xf32>
    %23 = arith.addf %20, %22 : vector<4x1280xf32>
    %cst_30 = arith.constant 0.000000e+00 : f32
    %24 = vector.broadcast %cst_30 : f32 to vector<4x1280xf32>
    %25 = arith.maximumf %23, %24 : vector<4x1280xf32>
    %c0_31 = arith.constant 0 : index
    %c0_32 = arith.constant 0 : index
    %c0_33 = arith.constant 0 : index
    %26 = vector.load %arg5[%c0_31, %c0_32, %c0_33] : memref<1x4x1280xf32, #tpu.memory_space<vmem>>, vector<1x4x1280xf32>
    %27 = vector.shape_cast %26 : vector<1x4x1280xf32> to vector<4x1280xf32>
    %28 = vector.shape_cast %25 : vector<4x1280xf32> to vector<1x4x1280xf32>
    tpu.vector_store %arg5[%c0_31, %c0_32, %c0_33], %28 {strides = array<i32>} : memref<1x4x1280xf32, #tpu.memory_space<vmem>>, vector<1x4x1280xf32>,
    return
  }
  func.func @transform_0(%arg0: i32, %arg1: i32) -> (i32, i32, i32, i32) {
    %c0_i32 = arith.constant 0 : i32
    %c0_i32_0 = arith.constant 0 : i32
    %c0_i32_1 = arith.constant 0 : i32
    return %arg0, %arg1, %c0_i32, %c0_i32_0 : i32, i32, i32, i32
  }
  func.func @transform_1(%arg0: i32, %arg1: i32) -> (i32, i32) {
    %c0_i32 = arith.constant 0 : i32
    %c0_i32_0 = arith.constant 0 : i32
    %c0_i32_1 = arith.constant 0 : i32
    return %c0_i32, %c0_i32_0 : i32, i32
  }
  func.func @transform_2(%arg0: i32, %arg1: i32) -> (i32, i32) {
    %c0_i32 = arith.constant 0 : i32
    %c0_i32_0 = arith.constant 0 : i32
    %c0_i32_1 = arith.constant 0 : i32
    return %c0_i32, %c0_i32_0 : i32, i32
  }
  func.func @transform_3(%arg0: i32, %arg1: i32) -> (i32, i32, i32) {
    %c0_i32 = arith.constant 0 : i32
    %c0_i32_0 = arith.constant 0 : i32
    return %arg0, %c0_i32, %arg1 : i32, i32, i32
  }
}

</mosaic_0001>

<llo_original>
// kernel: up_conv_forward.2
$region0: #{up_conv_forward.2}
  #allocation0 [shape = 'u32[]', space=smem, size = 0x4, offset = 0x4, fixed_abs, tag = 'smem constant byte address 0x4 - core index']
  #allocation1 [shape = 'u32[144,128]{1,0:T(1,128)}', space=vmem, size = 0x12000, scoped, tag = 'internal scratch']
  %s0 = inlined_call_operand.vmem [shape: bf16[2,1,4,439], index: 0, kind: input, shape index: {}]
  %s1 = inlined_call_operand.vmem [shape: bf16[8,36], index: 1, kind: input, shape index: {}]
  %s2 = inlined_call_operand.vmem [shape: f32[8,1], index: 2, kind: input, shape index: {}]
  %s3 = inlined_call_operand.vmem [shape: f32[2,8,384], index: 3, kind: output, shape index: {}]
  %s4 = sld [smem:[#allocation0]]
  $region45: #{up_conv_forward.2} parent=0
    _
  %s6 = ssub.s32 1, %s4
  %s7 = scalar_select 0, %s6, %s4
  loop: start=0, step=1, limit=4
  $region2: #{up_conv_forward.2} parent=0 // loop_pre_header
    _
  $region3: #{up_conv_forward.2} parent=0 // loop_header
    %s9 = sphi 0, %s13
    %p10 = scmp.ge.s32.totalorder %s9, 4
    %s16 = sphi 0, %s28
    %s17 = sphi 0, %s24
    %s18 = sphi 0, %s16
    %s19 = sphi 0, %s17
    %s20 = sphi 0, %s18
    %s21 = sphi 0, %s19
    %s33 = sphi 0, %s35
    %s36 = sphi 0, %s33
    %s37 = sphi 0, %s36
    %s53 = sphi 0, %s37
    %s57 = sphi 0, %s57
    %s59 = sphi 0, %s57
    %s60 = sphi 0, %s59
    %s74 = sphi 0, %s60
    %s78 = sphi 0, %s78
    %s80 = sphi 0, %s78
    %s81 = sphi 0, %s80
    %s95 = sphi 0, %s81
    %s103 = sphi 0, %s105
    %s106 = sphi 0, %s103
    %s107 = sphi 0, %s106
    %s123 = sphi 0, %s107
  $region4: #{up_conv_forward.2} parent=0 // loop_header_branch
    %12 = sbr.rel (%p10) target = $region8
  $region5: #{up_conv_forward.2} parent=0 // loop_body
    %s14 = ssub.s32 %s9, 1
    %s15 = ssub.s32 %s9, 2
    %s22 = sadd.s32 1, %s17
    %p23 = scmp.ge.s32.totalorder %s22, 1
    %s24 = scalar_select %p23, 0, %s22
    %s25 = sadd.s32 1, %s16
    %s26 = scalar_select %p23, %s25, %s16
    %p27 = scmp.ge.s32.totalorder %s26, 2
    %s28 = scalar_select %p27, 0, %s26
    %s29 = ssub.s32 %s16, %s28
    %s30 = ssub.s32 %s17, %s24
    %s31 = sor.u32 %s29, %s30
    %p32 = scmp.eq.s32.totalorder %s31, 0
    %s34 = sadd.s32 %s33, 1
    %s35 = scalar_select %p32, %s33, %s34
    %p38 = pneg %p32
    %p39 = scmp.eq.s32.totalorder %s9, 1
    %p40 = por %p38, %p39
    %p41 = scmp.ne.s32.totalorder %s33, %s36
    %p42 = scmp.eq.s32.totalorder %s9, 0
    %p43 = por %p41, %p42
    %p44 = scmp.ne.s32.totalorder %s33, %s36
    %p45 = scmp.eq.s32.totalorder %s14, 1
    %p46 = por %p44, %p45
    %p47 = scmp.ne.s32.totalorder %s36, %s37
    %p48 = scmp.eq.s32.totalorder %s14, 0
    %p49 = por %p47, %p48
    %p50 = scmp.ne.s32.totalorder %s36, %s37
    %p51 = scmp.eq.s32.totalorder %s15, 1
    %p52 = por %p50, %p51
    %p54 = scmp.ne.s32.totalorder %s37, %s53
    %p55 = scmp.eq.s32.totalorder %s15, 0
    %p56 = por %p54, %p55
    %s58 = sadd.s32 %s57, 1
    %p61 = scmp.eq.s32.totalorder %s9, 1
    %p62 = scmp.ne.s32.totalorder %s57, %s59
    %p63 = scmp.eq.s32.totalorder %s9, 0
    %p64 = por %p62, %p63
    %p65 = scmp.ne.s32.totalorder %s57, %s59
    %p66 = scmp.eq.s32.totalorder %s14, 1
    %p67 = por %p65, %p66
    %p68 = scmp.ne.s32.totalorder %s59, %s60
    %p69 = scmp.eq.s32.totalorder %s14, 0
    %p70 = por %p68, %p69
    %p71 = scmp.ne.s32.totalorder %s59, %s60
    %p72 = scmp.eq.s32.totalorder %s15, 1
    %p73 = por %p71, %p72
    %p75 = scmp.ne.s32.totalorder %s60, %s74
    %p76 = scmp.eq.s32.totalorder %s15, 0
    %p77 = por %p75, %p76
    %s79 = sadd.s32 %s78, 1
    %p82 = scmp.eq.s32.totalorder %s9, 1
    %p83 = scmp.ne.s32.totalorder %s78, %s80
    %p84 = scmp.eq.s32.totalorder %s9, 0
    %p85 = por %p83, %p84
    %p86 = scmp.ne.s32.totalorder %s78, %s80
    %p87 = scmp.eq.s32.totalorder %s14, 1
    %p88 = por %p86, %p87
    %p89 = scmp.ne.s32.totalorder %s80, %s81
    %p90 = scmp.eq.s32.totalorder %s14, 0
    %p91 = por %p89, %p90
    %p92 = scmp.ne.s32.totalorder %s80, %s81
    %p93 = scmp.eq.s32.totalorder %s15, 1
    %p94 = por %p92, %p93
    %p96 = scmp.ne.s32.totalorder %s81, %s95
    %p97 = scmp.eq.s32.totalorder %s15, 0
    %p98 = por %p96, %p97
    %s99 = ssub.s32 %s16, %s28
    %s100 = ssub.s32 %s17, %s24
    %s101 = sor.u32 %s99, %s100
    %p102 = scmp.eq.s32.totalorder %s101, 0
    %s104 = sadd.s32 %s103, 1
    %s105 = scalar_select %p102, %s103, %s104
    %p108 = pneg %p102
    %p109 = scmp.eq.s32.totalorder %s9, 1
    %p110 = por %p108, %p109
    %p111 = scmp.ne.s32.totalorder %s103, %s106
    %p112 = scmp.eq.s32.totalorder %s9, 0
    %p113 = por %p111, %p112
    %p114 = scmp.ne.s32.totalorder %s103, %s106
    %p115 = scmp.eq.s32.totalorder %s14, 1
    %p116 = por %p114, %p115
    %p117 = scmp.ne.s32.totalorder %s106, %s107
    %p118 = scmp.eq.s32.totalorder %s14, 0
    %p119 = por %p117, %p118
    %p120 = scmp.ne.s32.totalorder %s106, %s107
    %p121 = scmp.eq.s32.totalorder %s15, 1
    %p122 = por %p120, %p121
    %p124 = scmp.ne.s32.totalorder %s107, %s123
    %p125 = scmp.eq.s32.totalorder %s15, 0
    %p126 = por %p124, %p125
    %p127 = scmp.le.s32.totalorder 1, %s9
    %p128 = scmp.lt.s32.totalorder %s9, 3
    %p129 = pnand %p127, %p128
    %p130 = pneg %p129
    // Predicated region
    $region9: #{up_conv_forward.2} parent=5 // pred_check
      _
    $region10: #{up_conv_forward.2} parent=5 // pred_check_branch
      %132 = sbr.rel (%p129) target = $region12
    $region11: #{up_conv_forward.2} parent=5 // pred_region
      %s133 = ssub.s32 %s9, 1
      // Predicated region
      $region13: #{up_conv_forward.2} parent=11 // pred_check
        %p134 = pneg %p70
      $region14: #{up_conv_forward.2} parent=11 // pred_check_branch
        %136 = sbr.rel (%p134) target = $region16
      $region15: #{up_conv_forward.2} parent=11 // pred_region
        _
      $region16: #{up_conv_forward.2} parent=11 // pred_fallthru
        _
      // Predicated region
      $region17: #{up_conv_forward.2} parent=11 // pred_check
        %p137 = pneg %p91
      $region18: #{up_conv_forward.2} parent=11 // pred_check_branch
        %139 = sbr.rel (%p137) target = $region20
      $region19: #{up_conv_forward.2} parent=11 // pred_region
        _
      $region20: #{up_conv_forward.2} parent=11 // pred_fallthru
        _
    $region12: #{up_conv_forward.2} parent=5 // pred_fallthru
      _
    %p140 = scmp.lt.s32.totalorder %s9, 2
    // Predicated region
    $region21: #{up_conv_forward.2} parent=5 // pred_check
      %p141 = pneg %p140
    $region22: #{up_conv_forward.2} parent=5 // pred_check_branch
      %143 = sbr.rel (%p141) target = $region24
    $region23: #{up_conv_forward.2} parent=5 // pred_region
      // Predicated region
      $region25: #{up_conv_forward.2} parent=23 // pred_check
        %p144 = pneg %p43
      $region26: #{up_conv_forward.2} parent=23 // pred_check_branch
        %146 = sbr.rel (%p144) target = $region28
      $region27: #{up_conv_forward.2} parent=23 // pred_region
        %p147 = scmp.lt.s32.totalorder %s16, 1
        %s148 = scalar_select %p147, %s16, 1
        %p149 = scmp.lt.s32.totalorder %s17, 0
        %s150 = scalar_select %p149, %s17, 0
        %s151 = smul.addr %s150, 4
        %s152 = smul.addr %s148, 4
        %s153 = sadd.s32 %s151, %s152
        %s154 = smul.addr %s153, 2
        %s155 = scalar_lea.vmem %s0, %s154
      $region28: #{up_conv_forward.2} parent=23 // pred_fallthru
        _
    $region24: #{up_conv_forward.2} parent=5 // pred_fallthru
      _
    %p156 = scmp.le.s32.totalorder 1, %s9
    %p157 = scmp.lt.s32.totalorder %s9, 3
    %p158 = pnand %p156, %p157
    %p159 = pneg %p158
    // Predicated region
    $region29: #{up_conv_forward.2} parent=5 // pred_check
      _
    $region30: #{up_conv_forward.2} parent=5 // pred_check_branch
      %161 = sbr.rel (%p158) target = $region32
    $region31: #{up_conv_forward.2} parent=5 // pred_region
      %s162 = ssub.s32 %s9, 1
      %p163 = scmp.lt.s32.totalorder %s18, 1
      %s164 = scalar_select %p163, %s18, 1
      %p165 = scmp.lt.s32.totalorder %s19, 0
      %s166 = scalar_select %p165, %s19, 0
      %s167 = smul.addr %s166, 4
      %s168 = smul.addr %s164, 4
      %s169 = sadd.s32 %s167, %s168
      %s170 = smul.addr %s169, 2
      %s171 = scalar_lea.vmem %s0, %s170
      %p172 = pneg %p49
      %p173 = pneg %p46
      %p174 = pneg %p70
      %p175 = pneg %p67
      %p176 = pneg %p91
      %p177 = pneg %p88
      %p178 = pneg %p119
      %p179 = pneg %p116
      %s180 = smul.u32 3, %s19
      %p181 = scmp.lt.s32.totalorder %s18, 1
      %s182 = scalar_select %p181, %s18, 1
      %p183 = scmp.lt.s32.totalorder %s180, 2
      %s184 = scalar_select %p183, %s180, 2
      %s185 = smul.addr %s182, 3
      %s186 = sadd.s32 %s184, %s185
      %s187 = smul.addr %s186, 8
      %s188 = scalar_lea.vmem %s3, %s187
      %p189 = scmp.lt.s32.totalorder %s18, 1
      %s190 = scalar_select %p189, %s18, 1
      %p191 = scmp.lt.s32.totalorder %s19, 0
      %s192 = scalar_select %p191, %s19, 0
      %s193 = smul.addr %s192, 4
      %s194 = smul.addr %s190, 4
      %s195 = sadd.s32 %s193, %s194
      %s196 = smul.addr %s195, 2
      %s197 = scalar_lea.vmem %s0, %s196
      %s198 = smul.u32 3, %s19
      %p199 = scmp.lt.s32.totalorder %s18, 1
      %s200 = scalar_select %p199, %s18, 1
      %p201 = scmp.lt.s32.totalorder %s198, 2
      %s202 = scalar_select %p201, %s198, 2
      %s203 = smul.addr %s200, 3
      %s204 = sadd.s32 %s202, %s203
      %s205 = smul.addr %s204, 8
      %s206 = scalar_lea.vmem %s3, %s205
      %s207 = smul.u32 3, %s19
      %v209 = vld [vmem:[%s197] sm:$0xff]
      %v211 = vcombine.high %v209, %v209
      %v213 = vunpack.c.l.s4 1983009808
      %v214 = vunpack.c.0.s8 %v213
      %v215 = vlaneseq
      %v216 = vshrl.u32 %v215, 7
      %v217 = vsub.s32 %v214, %v216
      %v218 = vrot.slane %v209, %v217
      %v220 = vunpack.c.l.s4 1983009808
      %v221 = vunpack.c.0.s8 %v220
      %v222 = vlaneseq
      %v223 = vshrl.u32 %v222, 7
      %v224 = vsub.s32 %v221, %v223
      %v225 = vrot.slane %v211, %v224
      %v226 = vcombine.high %v218, %v218
      %v227 = vcombine.high %v225, %v225
      %v228 = vcombine.low %v209, %v209
      %v230 = vunpack.c.l.s4 1983009808
      %v231 = vunpack.c.0.s8 %v230
      %v232 = vlaneseq
      %v233 = vshrl.u32 %v232, 7
      %v234 = vsub.s32 %v231, %v233
      %v235 = vrot.slane %v228, %v234
      %v236 = vcombine.high %v235, %v235
      %237 = vrot.lane.b32.xlu0 %v235, 127
      %v238 = vpop.permute.xlu0 %237
      %239 = vrot.lane.b32.xlu0 %v236, 127
      %v240 = vpop.permute.xlu0 %239
      %241 = vrot.lane.b32.xlu0 %v218, 127
      %v242 = vpop.permute.xlu0 %241
      %243 = vrot.lane.b32.xlu0 %v226, 127
      %v244 = vpop.permute.xlu0 %243
      %vm245 = vcmask 1039360
      %v246 = vsel %vm245, %v238, %v240
      %v247 = vsel %vm245, %v240, %v242
      %v248 = vsel %vm245, %v242, %v244
      %v249 = vcombine.low %v218, %v218
      %v250 = vcombine.low %v225, %v225
      %251 = vrot.lane.b32.xlu0 %v249, 126
      %v252 = vpop.permute.xlu0 %251
      %253 = vrot.lane.b32.xlu0 %v218, 126
      %v254 = vpop.permute.xlu0 %253
      %255 = vrot.lane.b32.xlu0 %v250, 126
      %v256 = vpop.permute.xlu0 %255
      %257 = vrot.lane.b32.xlu0 %v225, 126
      %v258 = vpop.permute.xlu0 %257
      %vm259 = vcmask 1031168
      %v260 = vsel %vm259, %v252, %v254
      %v261 = vsel %vm259, %v254, %v256
      %v262 = vsel %vm259, %v256, %v258
      %v263 = vcombine.low %v235, %v235
      %264 = vrot.lane.b32.xlu0 %v263, 110
      %v265 = vpop.permute.xlu0 %264
      %266 = vrot.lane.b32.xlu0 %v235, 110
      %v267 = vpop.permute.xlu0 %266
      %268 = vrot.lane.b32.xlu0 %v249, 110
      %v269 = vpop.permute.xlu0 %268
      %270 = vrot.lane.b32.xlu0 %v218, 110
      %v271 = vpop.permute.xlu0 %270
      %vm272 = vcmask 900096
      %v273 = vsel %vm272, %v265, %v267
      %v274 = vsel %vm272, %v267, %v269
      %v275 = vsel %vm272, %v269, %v271
      %276 = vrot.lane.b32.xlu0 %v218, 109
      %v277 = vpop.permute.xlu0 %276
      %278 = vrot.lane.b32.xlu0 %v226, 109
      %v279 = vpop.permute.xlu0 %278
      %280 = vrot.lane.b32.xlu0 %v225, 109
      %v281 = vpop.permute.xlu0 %280
      %282 = vrot.lane.b32.xlu0 %v227, 109
      %v283 = vpop.permute.xlu0 %282
      %vm284 = vcmask 891904
      %v285 = vsel %vm284, %v277, %v279
      %v286 = vsel %vm284, %v279, %v281
      %v287 = vsel %vm284, %v281, %v283
      %288 = vrot.lane.b32.xlu0 %v235, 108
      %v289 = vpop.permute.xlu0 %288
      %290 = vrot.lane.b32.xlu0 %v236, 108
      %v291 = vpop.permute.xlu0 %290
      %292 = vrot.lane.b32.xlu0 %v218, 108
      %v293 = vpop.permute.xlu0 %292
      %294 = vrot.lane.b32.xlu0 %v226, 108
      %v295 = vpop.permute.xlu0 %294
      %vm296 = vcmask 883712
      %v297 = vsel %vm296, %v289, %v291
      %v298 = vsel %vm296, %v291, %v293
      %v299 = vsel %vm296, %v293, %v295
      %300 = vrot.lane.b32.xlu0 %v249, 92
      %v301 = vpop.permute.xlu0 %300
      %302 = vrot.lane.b32.xlu0 %v218, 92
      %v303 = vpop.permute.xlu0 %302
      %304 = vrot.lane.b32.xlu0 %v250, 92
      %v305 = vpop.permute.xlu0 %304
      %306 = vrot.lane.b32.xlu0 %v225, 92
      %v307 = vpop.permute.xlu0 %306
      %vm308 = vcmask 752640
      %v309 = vsel %vm308, %v301, %v303
      %v310 = vsel %vm308, %v303, %v305
      %v311 = vsel %vm308, %v305, %v307
      %312 = vrot.lane.b32.xlu0 %v263, 91
      %v313 = vpop.permute.xlu0 %312
      %314 = vrot.lane.b32.xlu0 %v235, 91
      %v315 = vpop.permute.xlu0 %314
      %316 = vrot.lane.b32.xlu0 %v249, 91
      %v317 = vpop.permute.xlu0 %316
      %318 = vrot.lane.b32.xlu0 %v218, 91
      %v319 = vpop.permute.xlu0 %318
      %vm320 = vcmask 744448
      %v321 = vsel %vm320, %v313, %v315
      %v322 = vsel %vm320, %v315, %v317
      %v323 = vsel %vm320, %v317, %v319
      %324 = vrot.lane.b32.xlu0 %v218, 90
      %v325 = vpop.permute.xlu0 %324
      %326 = vrot.lane.b32.xlu0 %v226, 90
      %v327 = vpop.permute.xlu0 %326
      %328 = vrot.lane.b32.xlu0 %v225, 90
      %v329 = vpop.permute.xlu0 %328
      %330 = vrot.lane.b32.xlu0 %v227, 90
      %v331 = vpop.permute.xlu0 %330
      %vm332 = vcmask 736256
      %v333 = vsel %vm332, %v325, %v327
      %v334 = vsel %vm332, %v327, %v329
      %v335 = vsel %vm332, %v329, %v331
      %vm336 = vcmask 1041408
      %v339 = vsel %vm336, %v218, %v246
      %v342 = vsel %vm336, %v226, %v247
      %v345 = vsel %vm336, %v225, %v248
      %v348 = vsel %vm336, %v227, %v244
      %vm349 = vcmask 1043456
      %v351 = vsel %vm349, %v339, %v260
      %v353 = vsel %vm349, %v342, %v261
      %v355 = vsel %vm349, %v345, %v262
      %v357 = vsel %vm349, %v348, %v258
      %vm358 = vcmask 1045504
      %v360 = vsel %vm358, %v351, %v273
      %v362 = vsel %vm358, %v353, %v274
      %v364 = vsel %vm358, %v355, %v275
      %v366 = vsel %vm358, %v357, %v271
      %v369 = vsel %vm336, %v285, %v297
      %v372 = vsel %vm336, %v286, %v298
      %v375 = vsel %vm336, %v287, %v299
      %v378 = vsel %vm336, %v283, %v295
      %v380 = vsel %vm349, %v369, %v309
      %v382 = vsel %vm349, %v372, %v310
      %v384 = vsel %vm349, %v375, %v311
      %v386 = vsel %vm349, %v378, %v307
      %v388 = vsel %vm358, %v380, %v321
      %v390 = vsel %vm358, %v382, %v322
      %v392 = vsel %vm358, %v384, %v323
      %v394 = vsel %vm358, %v386, %v319
      %v395 = vld [vmem:[%s1] sm:$0xf]
      %v396 = vld [vmem:[%s2] sm:$0xff]
      %398 = vset.pattern.permute.xlu0 0
      %399 = vperm.xlu0 %398, %v396
      %v400 = vpop.permute.xlu0 %399
      %410 = vrot.lane.b32.xlu0 %v360, 111
      %v411 = vpop.permute.xlu0 %410
      %412 = vrot.lane.b32.xlu0 %v362, 111
      %v413 = vpop.permute.xlu0 %412
      %414 = vrot.lane.b32.xlu0 %v364, 111
      %v415 = vpop.permute.xlu0 %414
      %416 = vrot.lane.b32.xlu0 %v366, 111
      %v417 = vpop.permute.xlu0 %416
      %418 = vrot.lane.b32.xlu0 %v388, 111
      %v419 = vpop.permute.xlu0 %418
      %420 = vrot.lane.b32.xlu0 %v390, 111
      %v421 = vpop.permute.xlu0 %420
      %422 = vrot.lane.b32.xlu0 %v392, 111
      %v423 = vpop.permute.xlu0 %422
      %424 = vrot.lane.b32.xlu0 %v394, 111
      %v425 = vpop.permute.xlu0 %424
      %426 = vrot.lane.b32.xlu0 %v333, 111
      %v427 = vpop.permute.xlu0 %426
      %428 = vrot.lane.b32.xlu0 %v334, 111
      %v429 = vpop.permute.xlu0 %428
      %430 = vrot.lane.b32.xlu0 %v335, 111
      %v431 = vpop.permute.xlu0 %430
      %432 = vrot.lane.b32.xlu0 %v331, 111
      %v433 = vpop.permute.xlu0 %432
      %vm434 = vcmask 908288
      %v435 = vsel %vm434, %v411, %v413
      %v436 = vsel %vm434, %v413, %v415
      %v437 = vsel %vm434, %v415, %v417
      %v438 = vsel %vm434, %v419, %v421
      %v439 = vsel %vm434, %v421, %v423
      %v440 = vsel %vm434, %v423, %v425
      %v441 = vsel %vm434, %v427, %v429
      %v442 = vsel %vm434, %v429, %v431
      %v443 = vsel %vm434, %v431, %v433
      %vm450 = vcmask 293888
      %v452 = vsel %vm450, %v395, 0
      %v455 = vsel %vm336, %v441, 0
      %v458 = vsel %vm336, %v442, 0
      %v461 = vsel %vm336, %v443, 0
      %463 = vmatprep.subr.bf16.mxu0 %v436
      %464 = vmatpush1.bf16.msra.mxu0 %v435
      %465 = vmatprep.subr.bf16.mxu0 %v439
      %466 = vmatpush1.bf16.msra.mxu0 %v438
      %467 = vmatprep.subr.bf16.mxu0 %v458
      %468 = vmatpush1.bf16.msra.mxu0 %v455
      %469 = vmatprep.subr.bf16.mxu0 0
      %470 = vmatpush1.bf16.msra.mxu0 0
      %471 = vmatprep.subr.bf16.mxu0 0
      %472 = vmatpush1.bf16.msra.mxu0 0
      %473 = vmatprep.subr.bf16.mxu0 0
      %474 = vmatpush1.bf16.msra.mxu0 0
      %475 = vmatprep.subr.bf16.mxu0 0
      %476 = vmatpush1.bf16.msra.mxu0 0
      %477 = vmatprep.subr.bf16.mxu0 0
      %478 = vmatpush1.bf16.msra.mxu0 0
      %479 = vmatprep.subr.bf16.mxu0 0
      %480 = vmatpush1.bf16.msra.mxu0 0
      %481 = vmatprep.subr.bf16.mxu0 0
      %482 = vmatpush1.bf16.msra.mxu0 0
      %483 = vmatprep.subr.bf16.mxu0 0
      %484 = vmatpush1.bf16.msra.mxu0 0
      %485 = vmatprep.subr.bf16.mxu0 0
      %486 = vmatpush1.bf16.msra.mxu0 0
      %487 = vmatprep.subr.bf16.mxu0 0
      %488 = vmatpush1.bf16.msra.mxu0 0
      %489 = vmatprep.subr.bf16.mxu0 0
      %490 = vmatpush1.bf16.msra.mxu0 0
      %491 = vmatprep.subr.bf16.mxu0 0
      %492 = vmatpush1.bf16.msra.mxu0 0
      %493 = vmatprep.subr.bf16.mxu0 0
      %494 = vmatpush1.bf16.msra.mxu0 0
      %495 = vmatprep.mubr.bf16.mxu0 0
      %496 = vmatmul.mubr.bf16.gmra.mrb[0].mxu0 %v452
      %v497 = vpop.f32.mrb[0].mxu0
      %v498 = vadd.f32 %v400, %v497
      %v499 = vpop.f32.mrb[0].mxu0
      %v500 = vadd.f32 %v400, %v499
      %v501 = vpop.f32.mrb[0].mxu0
      %v502 = vpop.f32.mrb[0].mxu0
      %503 = vdwg.mxu0
      %504 = vmatprep.subr.bf16.mxu0 0
      %505 = vmatpush1.bf16.msra.mxu0 %v437
      %506 = vmatprep.subr.bf16.mxu0 0
      %507 = vmatpush1.bf16.msra.mxu0 %v440
      %508 = vmatprep.subr.bf16.mxu0 0
      %509 = vmatpush1.bf16.msra.mxu0 %v461
      %510 = vmatprep.subr.bf16.mxu0 0
      %511 = vmatpush1.bf16.msra.mxu0 0
      %512 = vmatprep.subr.bf16.mxu0 0
      %513 = vmatpush1.bf16.msra.mxu0 0
      %514 = vmatprep.subr.bf16.mxu0 0
      %515 = vmatpush1.bf16.msra.mxu0 0
      %516 = vmatprep.subr.bf16.mxu0 0
      %517 = vmatpush1.bf16.msra.mxu0 0
      %518 = vmatprep.subr.bf16.mxu0 0
      %519 = vmatpush1.bf16.msra.mxu0 0
      %520 = vmatprep.subr.bf16.mxu0 0
      %521 = vmatpush1.bf16.msra.mxu0 0
      %522 = vmatprep.subr.bf16.mxu0 0
      %523 = vmatpush1.bf16.msra.mxu0 0
      %524 = vmatprep.subr.bf16.mxu0 0
      %525 = vmatpush1.bf16.msra.mxu0 0
      %526 = vmatprep.subr.bf16.mxu0 0
      %527 = vmatpush1.bf16.msra.mxu0 0
      %528 = vmatprep.subr.bf16.mxu0 0
      %529 = vmatpush1.bf16.msra.mxu0 0
      %530 = vmatprep.subr.bf16.mxu0 0
      %531 = vmatpush1.bf16.msra.mxu0 0
      %532 = vmatprep.subr.bf16.mxu0 0
      %533 = vmatpush1.bf16.msra.mxu0 0
      %534 = vmatprep.subr.bf16.mxu0 0
      %535 = vmatpush1.bf16.msra.mxu0 0
      %536 = vmatprep.mubr.bf16.mxu0 0
      %537 = vmatmul.mubr.bf16.gmra.mrb[0].mxu0 %v452
      %v538 = vpop.f32.mrb[0].mxu0
      %v539 = vadd.f32 %v400, %v538
      %v540 = vpop.f32.mrb[0].mxu0
      %v541 = vpop.f32.mrb[0].mxu0
      %v542 = vpop.f32.mrb[0].mxu0
      %543 = vdwg.mxu0
      %v544 = vmax.f32 %v498, 0.0
      %v545 = vmax.f32 %v500, 0.0
      %v546 = vmax.f32 %v539, 0.0
      %547 = vst [vmem:[%s206] sm:$0xff] %v544
      %548 = vst [vmem:[%s206 + $0x8] sm:$0xff] %v545
      %549 = vst [vmem:[%s206 + $0x10] sm:$0xff] %v546
      %s550 = smul.u32 3, %s19
      %p551 = scmp.lt.s32.totalorder %s18, 1
      %s552 = scalar_select %p551, %s18, 1
      %p553 = scmp.lt.s32.totalorder %s550, 2
      %s554 = scalar_select %p553, %s550, 2
      %s555 = smul.addr %s552, 3
      %s556 = sadd.s32 %s554, %s555
      %s557 = smul.addr %s556, 8
      %s558 = scalar_lea.vmem %s3, %s557
      // Predicated region
      $region33: #{up_conv_forward.2} parent=31 // pred_check
        %p559 = pneg %p116
      $region34: #{up_conv_forward.2} parent=31 // pred_check_branch
        %561 = sbr.rel (%p559) target = $region36
      $region35: #{up_conv_forward.2} parent=31 // pred_region
        %s562 = smul.u32 3, %s19
      $region36: #{up_conv_forward.2} parent=31 // pred_fallthru
        _
    $region32: #{up_conv_forward.2} parent=5 // pred_fallthru
      _
    %p563 = scmp.le.s32.totalorder 2, %s9
    // Predicated region
    $region37: #{up_conv_forward.2} parent=5 // pred_check
      %p564 = pneg %p563
    $region38: #{up_conv_forward.2} parent=5 // pred_check_branch
      %566 = sbr.rel (%p564) target = $region40
    $region39: #{up_conv_forward.2} parent=5 // pred_region
      %s567 = ssub.s32 %s9, 2
      // Predicated region
      $region41: #{up_conv_forward.2} parent=39 // pred_check
        %p568 = pneg %p122
      $region42: #{up_conv_forward.2} parent=39 // pred_check_branch
        %570 = sbr.rel (%p568) target = $region44
      $region43: #{up_conv_forward.2} parent=39 // pred_region
        %s571 = smul.u32 3, %s21
        %p572 = scmp.lt.s32.totalorder %s20, 1
        %s573 = scalar_select %p572, %s20, 1
        %p574 = scmp.lt.s32.totalorder %s571, 2
        %s575 = scalar_select %p574, %s571, 2
        %s576 = smul.addr %s573, 3
        %s577 = sadd.s32 %s575, %s576
        %s578 = smul.addr %s577, 8
        %s579 = scalar_lea.vmem %s3, %s578
      $region44: #{up_conv_forward.2} parent=39 // pred_fallthru
        _
    $region40: #{up_conv_forward.2} parent=5 // pred_fallthru
      _
  $region6: #{up_conv_forward.2} parent=0 // loop_footer
    %s13 = sadd.s32 1, %s9
  $region7: #{up_conv_forward.2} parent=0 // loop_footer_branch
    %8 = sbr.rel target = $region3
  $region8: #{up_conv_forward.2} parent=0 // loop_exit
    _

// kernel: up_conv_forward.3
$region0: #{up_conv_forward.3}
  #allocation0 [shape = 'u32[]', space=smem, size = 0x4, offset = 0x4, fixed_abs, tag = 'smem constant byte address 0x4 - core index']
  #allocation1 [shape = 'u32[144,128]{1,0:T(1,128)}', space=vmem, size = 0x12000, scoped, tag = 'internal scratch']
  %s0 = inlined_call_operand.vmem [shape: bf16[2,1,4,1383], index: 0, kind: input, shape index: {}]
  %s1 = inlined_call_operand.vmem [shape: bf16[4,36], index: 1, kind: input, shape index: {}]
  %s2 = inlined_call_operand.vmem [shape: f32[4,1], index: 2, kind: input, shape index: {}]
  %s3 = inlined_call_operand.vmem [shape: f32[2,4,1280], index: 3, kind: output, shape index: {}]
  %s4 = sld [smem:[#allocation0]]
  $region45: #{up_conv_forward.3} parent=0
    _
  %s6 = ssub.s32 1, %s4
  %s7 = scalar_select 0, %s6, %s4
  loop: start=0, step=1, limit=4
  $region2: #{up_conv_forward.3} parent=0 // loop_pre_header
    _
  $region3: #{up_conv_forward.3} parent=0 // loop_header
    %s9 = sphi 0, %s13
    %p10 = scmp.ge.s32.totalorder %s9, 4
    %s16 = sphi 0, %s28
    %s17 = sphi 0, %s24
    %s18 = sphi 0, %s16
    %s19 = sphi 0, %s17
    %s20 = sphi 0, %s18
    %s21 = sphi 0, %s19
    %s33 = sphi 0, %s35
    %s36 = sphi 0, %s33
    %s37 = sphi 0, %s36
    %s53 = sphi 0, %s37
    %s57 = sphi 0, %s57
    %s59 = sphi 0, %s57
    %s60 = sphi 0, %s59
    %s74 = sphi 0, %s60
    %s78 = sphi 0, %s78
    %s80 = sphi 0, %s78
    %s81 = sphi 0, %s80
    %s95 = sphi 0, %s81
    %s103 = sphi 0, %s105
    %s106 = sphi 0, %s103
    %s107 = sphi 0, %s106
    %s123 = sphi 0, %s107
  $region4: #{up_conv_forward.3} parent=0 // loop_header_branch
    %12 = sbr.rel (%p10) target = $region8
  $region5: #{up_conv_forward.3} parent=0 // loop_body
    %s14 = ssub.s32 %s9, 1
    %s15 = ssub.s32 %s9, 2
    %s22 = sadd.s32 1, %s17
    %p23 = scmp.ge.s32.totalorder %s22, 1
    %s24 = scalar_select %p23, 0, %s22
    %s25 = sadd.s32 1, %s16
    %s26 = scalar_select %p23, %s25, %s16
    %p27 = scmp.ge.s32.totalorder %s26, 2
    %s28 = scalar_select %p27, 0, %s26
    %s29 = ssub.s32 %s16, %s28
    %s30 = ssub.s32 %s17, %s24
    %s31 = sor.u32 %s29, %s30
    %p32 = scmp.eq.s32.totalorder %s31, 0
    %s34 = sadd.s32 %s33, 1
    %s35 = scalar_select %p32, %s33, %s34
    %p38 = pneg %p32
    %p39 = scmp.eq.s32.totalorder %s9, 1
    %p40 = por %p38, %p39
    %p41 = scmp.ne.s32.totalorder %s33, %s36
    %p42 = scmp.eq.s32.totalorder %s9, 0
    %p43 = por %p41, %p42
    %p44 = scmp.ne.s32.totalorder %s33, %s36
    %p45 = scmp.eq.s32.totalorder %s14, 1
    %p46 = por %p44, %p45
    %p47 = scmp.ne.s32.totalorder %s36, %s37
    %p48 = scmp.eq.s32.totalorder %s14, 0
    %p49 = por %p47, %p48
    %p50 = scmp.ne.s32.totalorder %s36, %s37
    %p51 = scmp.eq.s32.totalorder %s15, 1
    %p52 = por %p50, %p51
    %p54 = scmp.ne.s32.totalorder %s37, %s53
    %p55 = scmp.eq.s32.totalorder %s15, 0
    %p56 = por %p54, %p55
    %s58 = sadd.s32 %s57, 1
    %p61 = scmp.eq.s32.totalorder %s9, 1
    %p62 = scmp.ne.s32.totalorder %s57, %s59
    %p63 = scmp.eq.s32.totalorder %s9, 0
    %p64 = por %p62, %p63
    %p65 = scmp.ne.s32.totalorder %s57, %s59
    %p66 = scmp.eq.s32.totalorder %s14, 1
    %p67 = por %p65, %p66
    %p68 = scmp.ne.s32.totalorder %s59, %s60
    %p69 = scmp.eq.s32.totalorder %s14, 0
    %p70 = por %p68, %p69
    %p71 = scmp.ne.s32.totalorder %s59, %s60
    %p72 = scmp.eq.s32.totalorder %s15, 1
    %p73 = por %p71, %p72
    %p75 = scmp.ne.s32.totalorder %s60, %s74
    %p76 = scmp.eq.s32.totalorder %s15, 0
    %p77 = por %p75, %p76
    %s79 = sadd.s32 %s78, 1
    %p82 = scmp.eq.s32.totalorder %s9, 1
    %p83 = scmp.ne.s32.totalorder %s78, %s80
    %p84 = scmp.eq.s32.totalorder %s9, 0
    %p85 = por %p83, %p84
    %p86 = scmp.ne.s32.totalorder %s78, %s80
    %p87 = scmp.eq.s32.totalorder %s14, 1
    %p88 = por %p86, %p87
    %p89 = scmp.ne.s32.totalorder %s80, %s81
    %p90 = scmp.eq.s32.totalorder %s14, 0
    %p91 = por %p89, %p90
    %p92 = scmp.ne.s32.totalorder %s80, %s81
    %p93 = scmp.eq.s32.totalorder %s15, 1
    %p94 = por %p92, %p93
    %p96 = scmp.ne.s32.totalorder %s81, %s95
    %p97 = scmp.eq.s32.totalorder %s15, 0
    %p98 = por %p96, %p97
    %s99 = ssub.s32 %s16, %s28
    %s100 = ssub.s32 %s17, %s24
    %s101 = sor.u32 %s99, %s100
    %p102 = scmp.eq.s32.totalorder %s101, 0
    %s104 = sadd.s32 %s103, 1
    %s105 = scalar_select %p102, %s103, %s104
    %p108 = pneg %p102
    %p109 = scmp.eq.s32.totalorder %s9, 1
    %p110 = por %p108, %p109
    %p111 = scmp.ne.s32.totalorder %s103, %s106
    %p112 = scmp.eq.s32.totalorder %s9, 0
    %p113 = por %p111, %p112
    %p114 = scmp.ne.s32.totalorder %s103, %s106
    %p115 = scmp.eq.s32.totalorder %s14, 1
    %p116 = por %p114, %p115
    %p117 = scmp.ne.s32.totalorder %s106, %s107
    %p118 = scmp.eq.s32.totalorder %s14, 0
    %p119 = por %p117, %p118
    %p120 = scmp.ne.s32.totalorder %s106, %s107
    %p121 = scmp.eq.s32.totalorder %s15, 1
    %p122 = por %p120, %p121
    %p124 = scmp.ne.s32.totalorder %s107, %s123
    %p125 = scmp.eq.s32.totalorder %s15, 0
    %p126 = por %p124, %p125
    %p127 = scmp.le.s32.totalorder 1, %s9
    %p128 = scmp.lt.s32.totalorder %s9, 3
    %p129 = pnand %p127, %p128
    %p130 = pneg %p129
    // Predicated region
    $region9: #{up_conv_forward.3} parent=5 // pred_check
      _
    $region10: #{up_conv_forward.3} parent=5 // pred_check_branch
      %132 = sbr.rel (%p129) target = $region12
    $region11: #{up_conv_forward.3} parent=5 // pred_region
      %s133 = ssub.s32 %s9, 1
      // Predicated region
      $region13: #{up_conv_forward.3} parent=11 // pred_check
        %p134 = pneg %p70
      $region14: #{up_conv_forward.3} parent=11 // pred_check_branch
        %136 = sbr.rel (%p134) target = $region16
      $region15: #{up_conv_forward.3} parent=11 // pred_region
        _
      $region16: #{up_conv_forward.3} parent=11 // pred_fallthru
        _
      // Predicated region
      $region17: #{up_conv_forward.3} parent=11 // pred_check
        %p137 = pneg %p91
      $region18: #{up_conv_forward.3} parent=11 // pred_check_branch
        %139 = sbr.rel (%p137) target = $region20
      $region19: #{up_conv_forward.3} parent=11 // pred_region
        _
      $region20: #{up_conv_forward.3} parent=11 // pred_fallthru
        _
    $region12: #{up_conv_forward.3} parent=5 // pred_fallthru
      _
    %p140 = scmp.lt.s32.totalorder %s9, 2
    // Predicated region
    $region21: #{up_conv_forward.3} parent=5 // pred_check
      %p141 = pneg %p140
    $region22: #{up_conv_forward.3} parent=5 // pred_check_branch
      %143 = sbr.rel (%p141) target = $region24
    $region23: #{up_conv_forward.3} parent=5 // pred_region
      // Predicated region
      $region25: #{up_conv_forward.3} parent=23 // pred_check
        %p144 = pneg %p43
      $region26: #{up_conv_forward.3} parent=23 // pred_check_branch
        %146 = sbr.rel (%p144) target = $region28
      $region27: #{up_conv_forward.3} parent=23 // pred_region
        %p147 = scmp.lt.s32.totalorder %s16, 1
        %s148 = scalar_select %p147, %s16, 1
        %p149 = scmp.lt.s32.totalorder %s17, 0
        %s150 = scalar_select %p149, %s17, 0
        %s151 = smul.addr %s150, 11
        %s152 = smul.addr %s148, 11
        %s153 = sadd.s32 %s151, %s152
        %s154 = smul.addr %s153, 2
        %s155 = scalar_lea.vmem %s0, %s154
      $region28: #{up_conv_forward.3} parent=23 // pred_fallthru
        _
    $region24: #{up_conv_forward.3} parent=5 // pred_fallthru
      _
    %p156 = scmp.le.s32.totalorder 1, %s9
    %p157 = scmp.lt.s32.totalorder %s9, 3
    %p158 = pnand %p156, %p157
    %p159 = pneg %p158
    // Predicated region
    $region29: #{up_conv_forward.3} parent=5 // pred_check
      _
    $region30: #{up_conv_forward.3} parent=5 // pred_check_branch
      %161 = sbr.rel (%p158) target = $region32
    $region31: #{up_conv_forward.3} parent=5 // pred_region
      %s162 = ssub.s32 %s9, 1
      %p163 = scmp.lt.s32.totalorder %s18, 1
      %s164 = scalar_select %p163, %s18, 1
      %p165 = scmp.lt.s32.totalorder %s19, 0
      %s166 = scalar_select %p165, %s19, 0
      %s167 = smul.addr %s166, 11
      %s168 = smul.addr %s164, 11
      %s169 = sadd.s32 %s167, %s168
      %s170 = smul.addr %s169, 2
      %s171 = scalar_lea.vmem %s0, %s170
      %p172 = pneg %p49
      %p173 = pneg %p46
      %p174 = pneg %p70
      %p175 = pneg %p67
      %p176 = pneg %p91
      %p177 = pneg %p88
      %p178 = pneg %p119
      %p179 = pneg %p116
      %s180 = smul.u32 10, %s19
      %p181 = scmp.lt.s32.totalorder %s18, 1
      %s182 = scalar_select %p181, %s18, 1
      %p183 = scmp.lt.s32.totalorder %s180, 9
      %s184 = scalar_select %p183, %s180, 9
      %s185 = smul.addr %s182, 10
      %s186 = sadd.s32 %s184, %s185
      %s187 = smul.addr %s186, 4
      %s188 = scalar_lea.vmem %s3, %s187
      %p189 = scmp.lt.s32.totalorder %s18, 1
      %s190 = scalar_select %p189, %s18, 1
      %p191 = scmp.lt.s32.totalorder %s19, 0
      %s192 = scalar_select %p191, %s19, 0
      %s193 = smul.addr %s192, 11
      %s194 = smul.addr %s190, 11
      %s195 = sadd.s32 %s193, %s194
      %s196 = smul.addr %s195, 2
      %s197 = scalar_lea.vmem %s0, %s196
      %s198 = smul.u32 10, %s19
      %p199 = scmp.lt.s32.totalorder %s18, 1
      %s200 = scalar_select %p199, %s18, 1
      %p201 = scmp.lt.s32.totalorder %s198, 9
      %s202 = scalar_select %p201, %s198, 9
      %s203 = smul.addr %s200, 10
      %s204 = sadd.s32 %s202, %s203
      %s205 = smul.addr %s204, 4
      %s206 = scalar_lea.vmem %s3, %s205
      %s207 = smul.u32 10, %s19
      %v209 = vld [vmem:[%s197] sm:$0xff]
      %v210 = vld [vmem:[%s197 + $0x8] sm:$0xff]
      %v211 = vld [vmem:[%s197 + $0x10] sm:$0x3f]
      %v215 = vcombine.high %v209, %v209
      %v217 = vunpack.c.l.s4 1983009808
      %v218 = vunpack.c.0.s8 %v217
      %v219 = vlaneseq
      %v220 = vshrl.u32 %v219, 7
      %v221 = vsub.s32 %v218, %v220
      %v222 = vrot.slane %v209, %v221
      %v224 = vunpack.c.l.s4 1983009808
      %v225 = vunpack.c.0.s8 %v224
      %v226 = vlaneseq
      %v227 = vshrl.u32 %v226, 7
      %v228 = vsub.s32 %v225, %v227
      %v229 = vrot.slane %v215, %v228
      %v230 = vcombine.high %v222, %v222
      %v231 = vcombine.high %v229, %v229
      %v232 = vcombine.high %v210, %v210
      %v234 = vunpack.c.l.s4 1983009808
      %v235 = vunpack.c.0.s8 %v234
      %v236 = vlaneseq
      %v237 = vshrl.u32 %v236, 7
      %v238 = vsub.s32 %v235, %v237
      %v239 = vrot.slane %v210, %v238
      %v241 = vunpack.c.l.s4 1983009808
      %v242 = vunpack.c.0.s8 %v241
      %v243 = vlaneseq
      %v244 = vshrl.u32 %v243, 7
      %v245 = vsub.s32 %v242, %v244
      %v246 = vrot.slane %v232, %v245
      %v247 = vcombine.high %v239, %v239
      %v248 = vcombine.high %v246, %v246
      %v249 = vcombine.high %v211, %v211
      %v251 = vunpack.c.l.s4 1983009808
      %v252 = vunpack.c.0.s8 %v251
      %v253 = vlaneseq
      %v254 = vshrl.u32 %v253, 7
      %v255 = vsub.s32 %v252, %v254
      %v256 = vrot.slane %v211, %v255
      %v258 = vunpack.c.l.s4 1983009808
      %v259 = vunpack.c.0.s8 %v258
      %v260 = vlaneseq
      %v261 = vshrl.u32 %v260, 7
      %v262 = vsub.s32 %v259, %v261
      %v263 = vrot.slane %v249, %v262
      %v264 = vcombine.high %v256, %v256
      %v265 = vcombine.low %v209, %v209
      %v267 = vunpack.c.l.s4 1983009808
      %v268 = vunpack.c.0.s8 %v267
      %v269 = vlaneseq
      %v270 = vshrl.u32 %v269, 7
      %v271 = vsub.s32 %v268, %v270
      %v272 = vrot.slane %v265, %v271
      %v273 = vcombine.high %v272, %v272
      %v274 = vcombine.low %v210, %v210
      %v276 = vunpack.c.l.s4 1983009808
      %v277 = vunpack.c.0.s8 %v276
      %v278 = vlaneseq
      %v279 = vshrl.u32 %v278, 7
      %v280 = vsub.s32 %v277, %v279
      %v281 = vrot.slane %v274, %v280
      %v282 = vcombine.high %v281, %v281
      %v283 = vcombine.low %v211, %v211
      %v285 = vunpack.c.l.s4 1983009808
      %v286 = vunpack.c.0.s8 %v285
      %v287 = vlaneseq
      %v288 = vshrl.u32 %v287, 7
      %v289 = vsub.s32 %v286, %v288
      %v290 = vrot.slane %v283, %v289
      %v291 = vcombine.high %v290, %v290
      %292 = vrot.lane.b32.xlu0 %v272, 127
      %v293 = vpop.permute.xlu0 %292
      %294 = vrot.lane.b32.xlu0 %v273, 127
      %v295 = vpop.permute.xlu0 %294
      %296 = vrot.lane.b32.xlu0 %v222, 127
      %v297 = vpop.permute.xlu0 %296
      %298 = vrot.lane.b32.xlu0 %v230, 127
      %v299 = vpop.permute.xlu0 %298
      %300 = vrot.lane.b32.xlu0 %v281, 127
      %v301 = vpop.permute.xlu0 %300
      %302 = vrot.lane.b32.xlu0 %v282, 127
      %v303 = vpop.permute.xlu0 %302
      %304 = vrot.lane.b32.xlu0 %v239, 127
      %v305 = vpop.permute.xlu0 %304
      %306 = vrot.lane.b32.xlu0 %v247, 127
      %v307 = vpop.permute.xlu0 %306
      %308 = vrot.lane.b32.xlu0 %v290, 127
      %v309 = vpop.permute.xlu0 %308
      %310 = vrot.lane.b32.xlu0 %v291, 127
      %v311 = vpop.permute.xlu0 %310
      %312 = vrot.lane.b32.xlu0 %v256, 127
      %v313 = vpop.permute.xlu0 %312
      %vm314 = vcmask 1039360
      %v315 = vsel %vm314, %v293, %v295
      %v316 = vsel %vm314, %v295, %v297
      %v317 = vsel %vm314, %v297, %v299
      %v318 = vsel %vm314, %v299, %v301
      %v319 = vsel %vm314, %v301, %v303
      %v320 = vsel %vm314, %v303, %v305
      %v321 = vsel %vm314, %v305, %v307
      %v322 = vsel %vm314, %v307, %v309
      %v323 = vsel %vm314, %v309, %v311
      %v324 = vsel %vm314, %v311, %v313
      %v325 = vcombine.low %v222, %v222
      %v326 = vcombine.low %v229, %v229
      %v327 = vcombine.low %v239, %v239
      %v328 = vcombine.low %v246, %v246
      %v329 = vcombine.low %v256, %v256
      %v330 = vcombine.low %v263, %v263
      %331 = vrot.lane.b32.xlu0 %v325, 126
      %v332 = vpop.permute.xlu0 %331
      %333 = vrot.lane.b32.xlu0 %v222, 126
      %v334 = vpop.permute.xlu0 %333
      %335 = vrot.lane.b32.xlu0 %v326, 126
      %v336 = vpop.permute.xlu0 %335
      %337 = vrot.lane.b32.xlu0 %v229, 126
      %v338 = vpop.permute.xlu0 %337
      %339 = vrot.lane.b32.xlu0 %v327, 126
      %v340 = vpop.permute.xlu0 %339
      %341 = vrot.lane.b32.xlu0 %v239, 126
      %v342 = vpop.permute.xlu0 %341
      %343 = vrot.lane.b32.xlu0 %v328, 126
      %v344 = vpop.permute.xlu0 %343
      %345 = vrot.lane.b32.xlu0 %v246, 126
      %v346 = vpop.permute.xlu0 %345
      %347 = vrot.lane.b32.xlu0 %v329, 126
      %v348 = vpop.permute.xlu0 %347
      %349 = vrot.lane.b32.xlu0 %v256, 126
      %v350 = vpop.permute.xlu0 %349
      %351 = vrot.lane.b32.xlu0 %v330, 126
      %v352 = vpop.permute.xlu0 %351
      %vm353 = vcmask 1031168
      %v354 = vsel %vm353, %v332, %v334
      %v355 = vsel %vm353, %v334, %v336
      %v356 = vsel %vm353, %v336, %v338
      %v357 = vsel %vm353, %v338, %v340
      %v358 = vsel %vm353, %v340, %v342
      %v359 = vsel %vm353, %v342, %v344
      %v360 = vsel %vm353, %v344, %v346
      %v361 = vsel %vm353, %v346, %v348
      %v362 = vsel %vm353, %v348, %v350
      %v363 = vsel %vm353, %v350, %v352
      %v364 = vcombine.low %v272, %v272
      %v365 = vcombine.low %v281, %v281
      %v366 = vcombine.low %v290, %v290
      %367 = vrot.lane.b32.xlu0 %v364, 94
      %v368 = vpop.permute.xlu0 %367
      %369 = vrot.lane.b32.xlu0 %v272, 94
      %v370 = vpop.permute.xlu0 %369
      %371 = vrot.lane.b32.xlu0 %v325, 94
      %v372 = vpop.permute.xlu0 %371
      %373 = vrot.lane.b32.xlu0 %v222, 94
      %v374 = vpop.permute.xlu0 %373
      %375 = vrot.lane.b32.xlu0 %v365, 94
      %v376 = vpop.permute.xlu0 %375
      %377 = vrot.lane.b32.xlu0 %v281, 94
      %v378 = vpop.permute.xlu0 %377
      %379 = vrot.lane.b32.xlu0 %v327, 94
      %v380 = vpop.permute.xlu0 %379
      %381 = vrot.lane.b32.xlu0 %v239, 94
      %v382 = vpop.permute.xlu0 %381
      %383 = vrot.lane.b32.xlu0 %v366, 94
      %v384 = vpop.permute.xlu0 %383
      %385 = vrot.lane.b32.xlu0 %v290, 94
      %v386 = vpop.permute.xlu0 %385
      %387 = vrot.lane.b32.xlu0 %v329, 94
      %v388 = vpop.permute.xlu0 %387
      %vm389 = vcmask 769024
      %v390 = vsel %vm389, %v368, %v370
      %v391 = vsel %vm389, %v370, %v372
      %v392 = vsel %vm389, %v372, %v374
      %v393 = vsel %vm389, %v374, %v376
      %v394 = vsel %vm389, %v376, %v378
      %v395 = vsel %vm389, %v378, %v380
      %v396 = vsel %vm389, %v380, %v382
      %v397 = vsel %vm389, %v382, %v384
      %v398 = vsel %vm389, %v384, %v386
      %v399 = vsel %vm389, %v386, %v388
      %400 = vrot.lane.b32.xlu0 %v222, 93
      %v401 = vpop.permute.xlu0 %400
      %402 = vrot.lane.b32.xlu0 %v230, 93
      %v403 = vpop.permute.xlu0 %402
      %404 = vrot.lane.b32.xlu0 %v229, 93
      %v405 = vpop.permute.xlu0 %404
      %406 = vrot.lane.b32.xlu0 %v231, 93
      %v407 = vpop.permute.xlu0 %406
      %408 = vrot.lane.b32.xlu0 %v239, 93
      %v409 = vpop.permute.xlu0 %408
      %410 = vrot.lane.b32.xlu0 %v247, 93
      %v411 = vpop.permute.xlu0 %410
      %412 = vrot.lane.b32.xlu0 %v246, 93
      %v413 = vpop.permute.xlu0 %412
      %414 = vrot.lane.b32.xlu0 %v248, 93
      %v415 = vpop.permute.xlu0 %414
      %416 = vrot.lane.b32.xlu0 %v256, 93
      %v417 = vpop.permute.xlu0 %416
      %418 = vrot.lane.b32.xlu0 %v264, 93
      %v419 = vpop.permute.xlu0 %418
      %420 = vrot.lane.b32.xlu0 %v263, 93
      %v421 = vpop.permute.xlu0 %420
      %vm422 = vcmask 760832
      %v423 = vsel %vm422, %v401, %v403
      %v424 = vsel %vm422, %v403, %v405
      %v425 = vsel %vm422, %v405, %v407
      %v426 = vsel %vm422, %v407, %v409
      %v427 = vsel %vm422, %v409, %v411
      %v428 = vsel %vm422, %v411, %v413
      %v429 = vsel %vm422, %v413, %v415
      %v430 = vsel %vm422, %v415, %v417
      %v431 = vsel %vm422, %v417, %v419
      %v432 = vsel %vm422, %v419, %v421
      %433 = vrot.lane.b32.xlu0 %v272, 92
      %v434 = vpop.permute.xlu0 %433
      %435 = vrot.lane.b32.xlu0 %v273, 92
      %v436 = vpop.permute.xlu0 %435
      %437 = vrot.lane.b32.xlu0 %v222, 92
      %v438 = vpop.permute.xlu0 %437
      %439 = vrot.lane.b32.xlu0 %v230, 92
      %v440 = vpop.permute.xlu0 %439
      %441 = vrot.lane.b32.xlu0 %v281, 92
      %v442 = vpop.permute.xlu0 %441
      %443 = vrot.lane.b32.xlu0 %v282, 92
      %v444 = vpop.permute.xlu0 %443
      %445 = vrot.lane.b32.xlu0 %v239, 92
      %v446 = vpop.permute.xlu0 %445
      %447 = vrot.lane.b32.xlu0 %v247, 92
      %v448 = vpop.permute.xlu0 %447
      %449 = vrot.lane.b32.xlu0 %v290, 92
      %v450 = vpop.permute.xlu0 %449
      %451 = vrot.lane.b32.xlu0 %v291, 92
      %v452 = vpop.permute.xlu0 %451
      %453 = vrot.lane.b32.xlu0 %v256, 92
      %v454 = vpop.permute.xlu0 %453
      %vm455 = vcmask 752640
      %v456 = vsel %vm455, %v434, %v436
      %v457 = vsel %vm455, %v436, %v438
      %v458 = vsel %vm455, %v438, %v440
      %v459 = vsel %vm455, %v440, %v442
      %v460 = vsel %vm455, %v442, %v444
      %v461 = vsel %vm455, %v444, %v446
      %v462 = vsel %vm455, %v446, %v448
      %v463 = vsel %vm455, %v448, %v450
      %v464 = vsel %vm455, %v450, %v452
      %v465 = vsel %vm455, %v452, %v454
      %466 = vrot.lane.b32.xlu0 %v325, 60
      %v467 = vpop.permute.xlu0 %466
      %468 = vrot.lane.b32.xlu0 %v222, 60
      %v469 = vpop.permute.xlu0 %468
      %470 = vrot.lane.b32.xlu0 %v326, 60
      %v471 = vpop.permute.xlu0 %470
      %472 = vrot.lane.b32.xlu0 %v229, 60
      %v473 = vpop.permute.xlu0 %472
      %474 = vrot.lane.b32.xlu0 %v327, 60
      %v475 = vpop.permute.xlu0 %474
      %476 = vrot.lane.b32.xlu0 %v239, 60
      %v477 = vpop.permute.xlu0 %476
      %478 = vrot.lane.b32.xlu0 %v328, 60
      %v479 = vpop.permute.xlu0 %478
      %480 = vrot.lane.b32.xlu0 %v246, 60
      %v481 = vpop.permute.xlu0 %480
      %482 = vrot.lane.b32.xlu0 %v329, 60
      %v483 = vpop.permute.xlu0 %482
      %484 = vrot.lane.b32.xlu0 %v256, 60
      %v485 = vpop.permute.xlu0 %484
      %486 = vrot.lane.b32.xlu0 %v330, 60
      %v487 = vpop.permute.xlu0 %486
      %vm488 = vcmask 490496
      %v489 = vsel %vm488, %v467, %v469
      %v490 = vsel %vm488, %v469, %v471
      %v491 = vsel %vm488, %v471, %v473
      %v492 = vsel %vm488, %v473, %v475
      %v493 = vsel %vm488, %v475, %v477
      %v494 = vsel %vm488, %v477, %v479
      %v495 = vsel %vm488, %v479, %v481
      %v496 = vsel %vm488, %v481, %v483
      %v497 = vsel %vm488, %v483, %v485
      %v498 = vsel %vm488, %v485, %v487
      %499 = vrot.lane.b32.xlu0 %v364, 59
      %v500 = vpop.permute.xlu0 %499
      %501 = vrot.lane.b32.xlu0 %v272, 59
      %v502 = vpop.permute.xlu0 %501
      %503 = vrot.lane.b32.xlu0 %v325, 59
      %v504 = vpop.permute.xlu0 %503
      %505 = vrot.lane.b32.xlu0 %v222, 59
      %v506 = vpop.permute.xlu0 %505
      %507 = vrot.lane.b32.xlu0 %v365, 59
      %v508 = vpop.permute.xlu0 %507
      %509 = vrot.lane.b32.xlu0 %v281, 59
      %v510 = vpop.permute.xlu0 %509
      %511 = vrot.lane.b32.xlu0 %v327, 59
      %v512 = vpop.permute.xlu0 %511
      %513 = vrot.lane.b32.xlu0 %v239, 59
      %v514 = vpop.permute.xlu0 %513
      %515 = vrot.lane.b32.xlu0 %v366, 59
      %v516 = vpop.permute.xlu0 %515
      %517 = vrot.lane.b32.xlu0 %v290, 59
      %v518 = vpop.permute.xlu0 %517
      %519 = vrot.lane.b32.xlu0 %v329, 59
      %v520 = vpop.permute.xlu0 %519
      %vm521 = vcmask 482304
      %v522 = vsel %vm521, %v500, %v502
      %v523 = vsel %vm521, %v502, %v504
      %v524 = vsel %vm521, %v504, %v506
      %v525 = vsel %vm521, %v506, %v508
      %v526 = vsel %vm521, %v508, %v510
      %v527 = vsel %vm521, %v510, %v512
      %v528 = vsel %vm521, %v512, %v514
      %v529 = vsel %vm521, %v514, %v516
      %v530 = vsel %vm521, %v516, %v518
      %v531 = vsel %vm521, %v518, %v520
      %532 = vrot.lane.b32.xlu0 %v222, 58
      %v533 = vpop.permute.xlu0 %532
      %534 = vrot.lane.b32.xlu0 %v230, 58
      %v535 = vpop.permute.xlu0 %534
      %536 = vrot.lane.b32.xlu0 %v229, 58
      %v537 = vpop.permute.xlu0 %536
      %538 = vrot.lane.b32.xlu0 %v231, 58
      %v539 = vpop.permute.xlu0 %538
      %540 = vrot.lane.b32.xlu0 %v239, 58
      %v541 = vpop.permute.xlu0 %540
      %542 = vrot.lane.b32.xlu0 %v247, 58
      %v543 = vpop.permute.xlu0 %542
      %544 = vrot.lane.b32.xlu0 %v246, 58
      %v545 = vpop.permute.xlu0 %544
      %546 = vrot.lane.b32.xlu0 %v248, 58
      %v547 = vpop.permute.xlu0 %546
      %548 = vrot.lane.b32.xlu0 %v256, 58
      %v549 = vpop.permute.xlu0 %548
      %550 = vrot.lane.b32.xlu0 %v264, 58
      %v551 = vpop.permute.xlu0 %550
      %552 = vrot.lane.b32.xlu0 %v263, 58
      %v553 = vpop.permute.xlu0 %552
      %vm554 = vcmask 474112
      %v555 = vsel %vm554, %v533, %v535
      %v556 = vsel %vm554, %v535, %v537
      %v557 = vsel %vm554, %v537, %v539
      %v558 = vsel %vm554, %v539, %v541
      %v559 = vsel %vm554, %v541, %v543
      %v560 = vsel %vm554, %v543, %v545
      %v561 = vsel %vm554, %v545, %v547
      %v562 = vsel %vm554, %v547, %v549
      %v563 = vsel %vm554, %v549, %v551
      %v564 = vsel %vm554, %v551, %v553
      %vm565 = vcmask 1041408
      %v568 = vsel %vm565, %v222, %v315
      %v571 = vsel %vm565, %v230, %v316
      %v574 = vsel %vm565, %v229, %v317
      %v577 = vsel %vm565, %v231, %v318
      %v580 = vsel %vm565, %v239, %v319
      %v583 = vsel %vm565, %v247, %v320
      %v586 = vsel %vm565, %v246, %v321
      %v589 = vsel %vm565, %v248, %v322
      %v592 = vsel %vm565, %v256, %v323
      %v595 = vsel %vm565, %v264, %v324
      %v598 = vsel %vm565, %v263, %v313
      %vm599 = vcmask 1043456
      %v601 = vsel %vm599, %v568, %v354
      %v603 = vsel %vm599, %v571, %v355
      %v605 = vsel %vm599, %v574, %v356
      %v607 = vsel %vm599, %v577, %v357
      %v609 = vsel %vm599, %v580, %v358
      %v611 = vsel %vm599, %v583, %v359
      %v613 = vsel %vm599, %v586, %v360
      %v615 = vsel %vm599, %v589, %v361
      %v617 = vsel %vm599, %v592, %v362
      %v619 = vsel %vm599, %v595, %v363
      %v621 = vsel %vm599, %v598, %v352
      %vm622 = vcmask 1045504
      %v624 = vsel %vm622, %v601, %v390
      %v626 = vsel %vm622, %v603, %v391
      %v628 = vsel %vm622, %v605, %v392
      %v630 = vsel %vm622, %v607, %v393
      %v632 = vsel %vm622, %v609, %v394
      %v634 = vsel %vm622, %v611, %v395
      %v636 = vsel %vm622, %v613, %v396
      %v638 = vsel %vm622, %v615, %v397
      %v640 = vsel %vm622, %v617, %v398
      %v642 = vsel %vm622, %v619, %v399
      %v644 = vsel %vm622, %v621, %v388
      %v647 = vsel %vm565, %v423, %v456
      %v650 = vsel %vm565, %v424, %v457
      %v653 = vsel %vm565, %v425, %v458
      %v656 = vsel %vm565, %v426, %v459
      %v659 = vsel %vm565, %v427, %v460
      %v662 = vsel %vm565, %v428, %v461
      %v665 = vsel %vm565, %v429, %v462
      %v668 = vsel %vm565, %v430, %v463
      %v671 = vsel %vm565, %v431, %v464
      %v674 = vsel %vm565, %v432, %v465
      %v677 = vsel %vm565, %v421, %v454
      %v679 = vsel %vm599, %v647, %v489
      %v681 = vsel %vm599, %v650, %v490
      %v683 = vsel %vm599, %v653, %v491
      %v685 = vsel %vm599, %v656, %v492
      %v687 = vsel %vm599, %v659, %v493
      %v689 = vsel %vm599, %v662, %v494
      %v691 = vsel %vm599, %v665, %v495
      %v693 = vsel %vm599, %v668, %v496
      %v695 = vsel %vm599, %v671, %v497
      %v697 = vsel %vm599, %v674, %v498
      %v699 = vsel %vm599, %v677, %v487
      %v701 = vsel %vm622, %v679, %v522
      %v703 = vsel %vm622, %v681, %v523
      %v705 = vsel %vm622, %v683, %v524
      %v707 = vsel %vm622, %v685, %v525
      %v709 = vsel %vm622, %v687, %v526
      %v711 = vsel %vm622, %v689, %v527
      %v713 = vsel %vm622, %v691, %v528
      %v715 = vsel %vm622, %v693, %v529
      %v717 = vsel %vm622, %v695, %v530
      %v719 = vsel %vm622, %v697, %v531
      %v721 = vsel %vm622, %v699, %v520
      %v722 = vld [vmem:[%s1] sm:$0x3]
      %v723 = vld [vmem:[%s2] sm:$0xf]
      %725 = vset.pattern.permute.xlu0 0
      %726 = vperm.xlu0 %725, %v723
      %v727 = vpop.permute.xlu0 %726
      %751 = vrot.lane.b32.xlu0 %v624, 95
      %v752 = vpop.permute.xlu0 %751
      %753 = vrot.lane.b32.xlu0 %v626, 95
      %v754 = vpop.permute.xlu0 %753
      %755 = vrot.lane.b32.xlu0 %v628, 95
      %v756 = vpop.permute.xlu0 %755
      %757 = vrot.lane.b32.xlu0 %v630, 95
      %v758 = vpop.permute.xlu0 %757
      %759 = vrot.lane.b32.xlu0 %v632, 95
      %v760 = vpop.permute.xlu0 %759
      %761 = vrot.lane.b32.xlu0 %v634, 95
      %v762 = vpop.permute.xlu0 %761
      %763 = vrot.lane.b32.xlu0 %v636, 95
      %v764 = vpop.permute.xlu0 %763
      %765 = vrot.lane.b32.xlu0 %v638, 95
      %v766 = vpop.permute.xlu0 %765
      %767 = vrot.lane.b32.xlu0 %v640, 95
      %v768 = vpop.permute.xlu0 %767
      %769 = vrot.lane.b32.xlu0 %v642, 95
      %v770 = vpop.permute.xlu0 %769
      %771 = vrot.lane.b32.xlu0 %v644, 95
      %v772 = vpop.permute.xlu0 %771
      %773 = vrot.lane.b32.xlu0 %v701, 95
      %v774 = vpop.permute.xlu0 %773
      %775 = vrot.lane.b32.xlu0 %v703, 95
      %v776 = vpop.permute.xlu0 %775
      %777 = vrot.lane.b32.xlu0 %v705, 95
      %v778 = vpop.permute.xlu0 %777
      %779 = vrot.lane.b32.xlu0 %v707, 95
      %v780 = vpop.permute.xlu0 %779
      %781 = vrot.lane.b32.xlu0 %v709, 95
      %v782 = vpop.permute.xlu0 %781
      %783 = vrot.lane.b32.xlu0 %v711, 95
      %v784 = vpop.permute.xlu0 %783
      %785 = vrot.lane.b32.xlu0 %v713, 95
      %v786 = vpop.permute.xlu0 %785
      %787 = vrot.lane.b32.xlu0 %v715, 95
      %v788 = vpop.permute.xlu0 %787
      %789 = vrot.lane.b32.xlu0 %v717, 95
      %v790 = vpop.permute.xlu0 %789
      %791 = vrot.lane.b32.xlu0 %v719, 95
      %v792 = vpop.permute.xlu0 %791
      %793 = vrot.lane.b32.xlu0 %v721, 95
      %v794 = vpop.permute.xlu0 %793
      %795 = vrot.lane.b32.xlu0 %v555, 95
      %v796 = vpop.permute.xlu0 %795
      %797 = vrot.lane.b32.xlu0 %v556, 95
      %v798 = vpop.permute.xlu0 %797
      %799 = vrot.lane.b32.xlu0 %v557, 95
      %v800 = vpop.permute.xlu0 %799
      %801 = vrot.lane.b32.xlu0 %v558, 95
      %v802 = vpop.permute.xlu0 %801
      %803 = vrot.lane.b32.xlu0 %v559, 95
      %v804 = vpop.permute.xlu0 %803
      %805 = vrot.lane.b32.xlu0 %v560, 95
      %v806 = vpop.permute.xlu0 %805
      %807 = vrot.lane.b32.xlu0 %v561, 95
      %v808 = vpop.permute.xlu0 %807
      %809 = vrot.lane.b32.xlu0 %v562, 95
      %v810 = vpop.permute.xlu0 %809
      %811 = vrot.lane.b32.xlu0 %v563, 95
      %v812 = vpop.permute.xlu0 %811
      %813 = vrot.lane.b32.xlu0 %v564, 95
      %v814 = vpop.permute.xlu0 %813
      %815 = vrot.lane.b32.xlu0 %v553, 95
      %v816 = vpop.permute.xlu0 %815
      %vm817 = vcmask 777216
      %v818 = vsel %vm817, %v752, %v754
      %v819 = vsel %vm817, %v754, %v756
      %v820 = vsel %vm817, %v756, %v758
      %v821 = vsel %vm817, %v758, %v760
      %v822 = vsel %vm817, %v760, %v762
      %v823 = vsel %vm817, %v762, %v764
      %v824 = vsel %vm817, %v764, %v766
      %v825 = vsel %vm817, %v766, %v768
      %v826 = vsel %vm817, %v768, %v770
      %v827 = vsel %vm817, %v770, %v772
      %v828 = vsel %vm817, %v774, %v776
      %v829 = vsel %vm817, %v776, %v778
      %v830 = vsel %vm817, %v778, %v780
      %v831 = vsel %vm817, %v780, %v782
      %v832 = vsel %vm817, %v782, %v784
      %v833 = vsel %vm817, %v784, %v786
      %v834 = vsel %vm817, %v786, %v788
      %v835 = vsel %vm817, %v788, %v790
      %v836 = vsel %vm817, %v790, %v792
      %v837 = vsel %vm817, %v792, %v794
      %v838 = vsel %vm817, %v796, %v798
      %v839 = vsel %vm817, %v798, %v800
      %v840 = vsel %vm817, %v800, %v802
      %v841 = vsel %vm817, %v802, %v804
      %v842 = vsel %vm817, %v804, %v806
      %v843 = vsel %vm817, %v806, %v808
      %v844 = vsel %vm817, %v808, %v810
      %v845 = vsel %vm817, %v810, %v812
      %v846 = vsel %vm817, %v812, %v814
      %v847 = vsel %vm817, %v814, %v816
      %vm868 = vcmask 293888
      %v870 = vsel %vm868, %v722, 0
      %v873 = vsel %vm565, %v838, 0
      %v876 = vsel %vm565, %v839, 0
      %v879 = vsel %vm565, %v840, 0
      %v882 = vsel %vm565, %v841, 0
      %v885 = vsel %vm565, %v842, 0
      %v888 = vsel %vm565, %v843, 0
      %v891 = vsel %vm565, %v844, 0
      %v894 = vsel %vm565, %v845, 0
      %v897 = vsel %vm565, %v846, 0
      %v900 = vsel %vm565, %v847, 0
      %902 = vmatprep.subr.bf16.mxu0 %v819
      %903 = vmatpush1.bf16.msra.mxu0 %v818
      %904 = vmatprep.subr.bf16.mxu0 %v829
      %905 = vmatpush1.bf16.msra.mxu0 %v828
      %906 = vmatprep.subr.bf16.mxu0 %v876
      %907 = vmatpush1.bf16.msra.mxu0 %v873
      %908 = vmatprep.subr.bf16.mxu0 0
      %909 = vmatpush1.bf16.msra.mxu0 0
      %910 = vmatprep.subr.bf16.mxu0 0
      %911 = vmatpush1.bf16.msra.mxu0 0
      %912 = vmatprep.subr.bf16.mxu0 0
      %913 = vmatpush1.bf16.msra.mxu0 0
      %914 = vmatprep.subr.bf16.mxu0 0
      %915 = vmatpush1.bf16.msra.mxu0 0
      %916 = vmatprep.subr.bf16.mxu0 0
      %917 = vmatpush1.bf16.msra.mxu0 0
      %918 = vmatprep.subr.bf16.mxu0 0
      %919 = vmatpush1.bf16.msra.mxu0 0
      %920 = vmatprep.subr.bf16.mxu0 0
      %921 = vmatpush1.bf16.msra.mxu0 0
      %922 = vmatprep.subr.bf16.mxu0 0
      %923 = vmatpush1.bf16.msra.mxu0 0
      %924 = vmatprep.subr.bf16.mxu0 0
      %925 = vmatpush1.bf16.msra.mxu0 0
      %926 = vmatprep.subr.bf16.mxu0 0
      %927 = vmatpush1.bf16.msra.mxu0 0
      %928 = vmatprep.subr.bf16.mxu0 0
      %929 = vmatpush1.bf16.msra.mxu0 0
      %930 = vmatprep.subr.bf16.mxu0 0
      %931 = vmatpush1.bf16.msra.mxu0 0
      %932 = vmatprep.subr.bf16.mxu0 0
      %933 = vmatpush1.bf16.msra.mxu0 0
      %934 = vmatprep.mubr.bf16.mxu0 0
      %935 = vmatmul.mubr.bf16.gmra.mrb[0].mxu0 %v870
      %v936 = vpop.f32.mrb[0].mxu0
      %v937 = vadd.f32 %v727, %v936
      %v938 = vpop.f32.mrb[0].mxu0
      %v939 = vadd.f32 %v727, %v938
      %v940 = vpop.f32.mrb[0].mxu0
      %v941 = vpop.f32.mrb[0].mxu0
      %942 = vdwg.mxu0
      %943 = vmatprep.subr.bf16.mxu0 %v821
      %944 = vmatpush1.bf16.msra.mxu0 %v820
      %945 = vmatprep.subr.bf16.mxu0 %v831
      %946 = vmatpush1.bf16.msra.mxu0 %v830
      %947 = vmatprep.subr.bf16.mxu0 %v882
      %948 = vmatpush1.bf16.msra.mxu0 %v879
      %949 = vmatprep.subr.bf16.mxu0 0
      %950 = vmatpush1.bf16.msra.mxu0 0
      %951 = vmatprep.subr.bf16.mxu0 0
      %952 = vmatpush1.bf16.msra.mxu0 0
      %953 = vmatprep.subr.bf16.mxu0 0
      %954 = vmatpush1.bf16.msra.mxu0 0
      %955 = vmatprep.subr.bf16.mxu0 0
      %956 = vmatpush1.bf16.msra.mxu0 0
      %957 = vmatprep.subr.bf16.mxu0 0
      %958 = vmatpush1.bf16.msra.mxu0 0
      %959 = vmatprep.subr.bf16.mxu0 0
      %960 = vmatpush1.bf16.msra.mxu0 0
      %961 = vmatprep.subr.bf16.mxu0 0
      %962 = vmatpush1.bf16.msra.mxu0 0
      %963 = vmatprep.subr.bf16.mxu0 0
      %964 = vmatpush1.bf16.msra.mxu0 0
      %965 = vmatprep.subr.bf16.mxu0 0
      %966 = vmatpush1.bf16.msra.mxu0 0
      %967 = vmatprep.subr.bf16.mxu0 0
      %968 = vmatpush1.bf16.msra.mxu0 0
      %969 = vmatprep.subr.bf16.mxu0 0
      %970 = vmatpush1.bf16.msra.mxu0 0
      %971 = vmatprep.subr.bf16.mxu0 0
      %972 = vmatpush1.bf16.msra.mxu0 0
      %973 = vmatprep.subr.bf16.mxu0 0
      %974 = vmatpush1.bf16.msra.mxu0 0
      %975 = vmatprep.mubr.bf16.mxu0 0
      %976 = vmatmul.mubr.bf16.gmra.mrb[0].mxu0 %v870
      %v977 = vpop.f32.mrb[0].mxu0
      %v978 = vadd.f32 %v727, %v977
      %v979 = vpop.f32.mrb[0].mxu0
      %v980 = vadd.f32 %v727, %v979
      %v981 = vpop.f32.mrb[0].mxu0
      %v982 = vpop.f32.mrb[0].mxu0
      %983 = vdwg.mxu0
      %984 = vmatprep.subr.bf16.mxu0 %v823
      %985 = vmatpush1.bf16.msra.mxu0 %v822
      %986 = vmatprep.subr.bf16.mxu0 %v833
      %987 = vmatpush1.bf16.msra.mxu0 %v832
      %988 = vmatprep.subr.bf16.mxu0 %v888
      %989 = vmatpush1.bf16.msra.mxu0 %v885
      %990 = vmatprep.subr.bf16.mxu0 0
      %991 = vmatpush1.bf16.msra.mxu0 0
      %992 = vmatprep.subr.bf16.mxu0 0
      %993 = vmatpush1.bf16.msra.mxu0 0
      %994 = vmatprep.subr.bf16.mxu0 0
      %995 = vmatpush1.bf16.msra.mxu0 0
      %996 = vmatprep.subr.bf16.mxu0 0
      %997 = vmatpush1.bf16.msra.mxu0 0
      %998 = vmatprep.subr.bf16.mxu0 0
      %999 = vmatpush1.bf16.msra.mxu0 0
      %1000 = vmatprep.subr.bf16.mxu0 0
      %1001 = vmatpush1.bf16.msra.mxu0 0
      %1002 = vmatprep.subr.bf16.mxu0 0
      %1003 = vmatpush1.bf16.msra.mxu0 0
      %1004 = vmatprep.subr.bf16.mxu0 0
      %1005 = vmatpush1.bf16.msra.mxu0 0
      %1006 = vmatprep.subr.bf16.mxu0 0
      %1007 = vmatpush1.bf16.msra.mxu0 0
      %1008 = vmatprep.subr.bf16.mxu0 0
      %1009 = vmatpush1.bf16.msra.mxu0 0
      %1010 = vmatprep.subr.bf16.mxu0 0
      %1011 = vmatpush1.bf16.msra.mxu0 0
      %1012 = vmatprep.subr.bf16.mxu0 0
      %1013 = vmatpush1.bf16.msra.mxu0 0
      %1014 = vmatprep.subr.bf16.mxu0 0
      %1015 = vmatpush1.bf16.msra.mxu0 0
      %1016 = vmatprep.mubr.bf16.mxu0 0
      %1017 = vmatmul.mubr.bf16.gmra.mrb[0].mxu0 %v870
      %v1018 = vpop.f32.mrb[0].mxu0
      %v1019 = vadd.f32 %v727, %v1018
      %v1020 = vpop.f32.mrb[0].mxu0
      %v1021 = vadd.f32 %v727, %v1020
      %v1022 = vpop.f32.mrb[0].mxu0
      %v1023 = vpop.f32.mrb[0].mxu0
      %1024 = vdwg.mxu0
      %1025 = vmatprep.subr.bf16.mxu0 %v825
      %1026 = vmatpush1.bf16.msra.mxu0 %v824
      %1027 = vmatprep.subr.bf16.mxu0 %v835
      %1028 = vmatpush1.bf16.msra.mxu0 %v834
      %1029 = vmatprep.subr.bf16.mxu0 %v894
      %1030 = vmatpush1.bf16.msra.mxu0 %v891
      %1031 = vmatprep.subr.bf16.mxu0 0
      %1032 = vmatpush1.bf16.msra.mxu0 0
      %1033 = vmatprep.subr.bf16.mxu0 0
      %1034 = vmatpush1.bf16.msra.mxu0 0
      %1035 = vmatprep.subr.bf16.mxu0 0
      %1036 = vmatpush1.bf16.msra.mxu0 0
      %1037 = vmatprep.subr.bf16.mxu0 0
      %1038 = vmatpush1.bf16.msra.mxu0 0
      %1039 = vmatprep.subr.bf16.mxu0 0
      %1040 = vmatpush1.bf16.msra.mxu0 0
      %1041 = vmatprep.subr.bf16.mxu0 0
      %1042 = vmatpush1.bf16.msra.mxu0 0
      %1043 = vmatprep.subr.bf16.mxu0 0
      %1044 = vmatpush1.bf16.msra.mxu0 0
      %1045 = vmatprep.subr.bf16.mxu0 0
      %1046 = vmatpush1.bf16.msra.mxu0 0
      %1047 = vmatprep.subr.bf16.mxu0 0
      %1048 = vmatpush1.bf16.msra.mxu0 0
      %1049 = vmatprep.subr.bf16.mxu0 0
      %1050 = vmatpush1.bf16.msra.mxu0 0
      %1051 = vmatprep.subr.bf16.mxu0 0
      %1052 = vmatpush1.bf16.msra.mxu0 0
      %1053 = vmatprep.subr.bf16.mxu0 0
      %1054 = vmatpush1.bf16.msra.mxu0 0
      %1055 = vmatprep.subr.bf16.mxu0 0
      %1056 = vmatpush1.bf16.msra.mxu0 0
      %1057 = vmatprep.mubr.bf16.mxu0 0
      %1058 = vmatmul.mubr.bf16.gmra.mrb[0].mxu0 %v870
      %v1059 = vpop.f32.mrb[0].mxu0
      %v1060 = vadd.f32 %v727, %v1059
      %v1061 = vpop.f32.mrb[0].mxu0
      %v1062 = vadd.f32 %v727, %v1061
      %v1063 = vpop.f32.mrb[0].mxu0
      %v1064 = vpop.f32.mrb[0].mxu0
      %1065 = vdwg.mxu0
      %1066 = vmatprep.subr.bf16.mxu0 %v827
      %1067 = vmatpush1.bf16.msra.mxu0 %v826
      %1068 = vmatprep.subr.bf16.mxu0 %v837
      %1069 = vmatpush1.bf16.msra.mxu0 %v836
      %1070 = vmatprep.subr.bf16.mxu0 %v900
      %1071 = vmatpush1.bf16.msra.mxu0 %v897
      %1072 = vmatprep.subr.bf16.mxu0 0
      %1073 = vmatpush1.bf16.msra.mxu0 0
      %1074 = vmatprep.subr.bf16.mxu0 0
      %1075 = vmatpush1.bf16.msra.mxu0 0
      %1076 = vmatprep.subr.bf16.mxu0 0
      %1077 = vmatpush1.bf16.msra.mxu0 0
      %1078 = vmatprep.subr.bf16.mxu0 0
      %1079 = vmatpush1.bf16.msra.mxu0 0
      %1080 = vmatprep.subr.bf16.mxu0 0
      %1081 = vmatpush1.bf16.msra.mxu0 0
      %1082 = vmatprep.subr.bf16.mxu0 0
      %1083 = vmatpush1.bf16.msra.mxu0 0
      %1084 = vmatprep.subr.bf16.mxu0 0
      %1085 = vmatpush1.bf16.msra.mxu0 0
      %1086 = vmatprep.subr.bf16.mxu0 0
      %1087 = vmatpush1.bf16.msra.mxu0 0
      %1088 = vmatprep.subr.bf16.mxu0 0
      %1089 = vmatpush1.bf16.msra.mxu0 0
      %1090 = vmatprep.subr.bf16.mxu0 0
      %1091 = vmatpush1.bf16.msra.mxu0 0
      %1092 = vmatprep.subr.bf16.mxu0 0
      %1093 = vmatpush1.bf16.msra.mxu0 0
      %1094 = vmatprep.subr.bf16.mxu0 0
      %1095 = vmatpush1.bf16.msra.mxu0 0
      %1096 = vmatprep.subr.bf16.mxu0 0
      %1097 = vmatpush1.bf16.msra.mxu0 0
      %1098 = vmatprep.mubr.bf16.mxu0 0
      %1099 = vmatmul.mubr.bf16.gmra.mrb[0].mxu0 %v870
      %v1100 = vpop.f32.mrb[0].mxu0
      %v1101 = vadd.f32 %v727, %v1100
      %v1102 = vpop.f32.mrb[0].mxu0
      %v1103 = vadd.f32 %v727, %v1102
      %v1104 = vpop.f32.mrb[0].mxu0
      %v1105 = vpop.f32.mrb[0].mxu0
      %1106 = vdwg.mxu0
      %v1107 = vmax.f32 %v937, 0.0
      %v1108 = vmax.f32 %v939, 0.0
      %v1109 = vmax.f32 %v978, 0.0
      %v1110 = vmax.f32 %v980, 0.0
      %v1111 = vmax.f32 %v1019, 0.0
      %v1112 = vmax.f32 %v1021, 0.0
      %v1113 = vmax.f32 %v1060, 0.0
      %v1114 = vmax.f32 %v1062, 0.0
      %v1115 = vmax.f32 %v1101, 0.0
      %v1116 = vmax.f32 %v1103, 0.0
      %v1127 = vcombine.low %v1107, %v1108
      %v1128 = vcombine.low %v1109, %v1110
      %v1129 = vcombine.low %v1111, %v1112
      %v1130 = vcombine.low %v1113, %v1114
      %v1131 = vcombine.low %v1115, %v1116
      %1137 = vst [vmem:[%s206] sm:$0xff] %v1127
      %1138 = vst [vmem:[%s206 + $0x8] sm:$0xff] %v1128
      %1139 = vst [vmem:[%s206 + $0x10] sm:$0xff] %v1129
      %1140 = vst [vmem:[%s206 + $0x18] sm:$0xff] %v1130
      %1141 = vst [vmem:[%s206 + $0x20] sm:$0xff] %v1131
      %s1142 = smul.u32 10, %s19
      %p1143 = scmp.lt.s32.totalorder %s18, 1
      %s1144 = scalar_select %p1143, %s18, 1
      %p1145 = scmp.lt.s32.totalorder %s1142, 9
      %s1146 = scalar_select %p1145, %s1142, 9
      %s1147 = smul.addr %s1144, 10
      %s1148 = sadd.s32 %s1146, %s1147
      %s1149 = smul.addr %s1148, 4
      %s1150 = scalar_lea.vmem %s3, %s1149
      // Predicated region
      $region33: #{up_conv_forward.3} parent=31 // pred_check
        %p1151 = pneg %p116
      $region34: #{up_conv_forward.3} parent=31 // pred_check_branch
        %1153 = sbr.rel (%p1151) target = $region36
      $region35: #{up_conv_forward.3} parent=31 // pred_region
        %s1154 = smul.u32 10, %s19
      $region36: #{up_conv_forward.3} parent=31 // pred_fallthru
        _
    $region32: #{up_conv_forward.3} parent=5 // pred_fallthru
      _
    %p1155 = scmp.le.s32.totalorder 2, %s9
    // Predicated region
    $region37: #{up_conv_forward.3} parent=5 // pred_check
      %p1156 = pneg %p1155
    $region38: #{up_conv_forward.3} parent=5 // pred_check_branch
      %1158 = sbr.rel (%p1156) target = $region40
    $region39: #{up_conv_forward.3} parent=5 // pred_region
      %s1159 = ssub.s32 %s9, 2
      // Predicated region
      $region41: #{up_conv_forward.3} parent=39 // pred_check
        %p1160 = pneg %p122
      $region42: #{up_conv_forward.3} parent=39 // pred_check_branch
        %1162 = sbr.rel (%p1160) target = $region44
      $region43: #{up_conv_forward.3} parent=39 // pred_region
        %s1163 = smul.u32 10, %s21
        %p1164 = scmp.lt.s32.totalorder %s20, 1
        %s1165 = scalar_select %p1164, %s20, 1
        %p1166 = scmp.lt.s32.totalorder %s1163, 9
        %s1167 = scalar_select %p1166, %s1163, 9
        %s1168 = smul.addr %s1165, 10
        %s1169 = sadd.s32 %s1167, %s1168
        %s1170 = smul.addr %s1169, 4
        %s1171 = scalar_lea.vmem %s3, %s1170
      $region44: #{up_conv_forward.3} parent=39 // pred_fallthru
        _
    $region40: #{up_conv_forward.3} parent=5 // pred_fallthru
      _
  $region6: #{up_conv_forward.3} parent=0 // loop_footer
    %s13 = sadd.s32 1, %s9
  $region7: #{up_conv_forward.3} parent=0 // loop_footer_branch
    %8 = sbr.rel target = $region3
  $region8: #{up_conv_forward.3} parent=0 // loop_exit
    _

</llo_original>
